<compile_context>
chip_gen: v5e
topology: v5e:2x2
jax: 0.10.0
libtpu: 0.0.40
codegen_flags: <defaults>
</compile_context>

<pallas_src>
import jax
import jax.numpy as jnp
from jax import lax
from jax.experimental import pallas as pl
from jax.experimental.pallas import tpu as pltpu

EPSILON = 1e-6       # gaussian.EPSILON
SIGMA_BOOST = 2.0    # gaussian.SIGMA_BOOST


# --------------------------------------------------------------------------
# Fused Pallas kernels: per-edge weights + self-loop mask + A-block build +
# MXU matmul, with x resident in a bf16 ping-pong VMEM buffer across layers.
# grid = (num_layers, row_tiles); both axes sequential ("arbitrary").
# TODO(synk): on v7x, split the row axis across the 2 TensorCores
# (core_map + VMEM_SHARED x + core_barrier per layer) to recover the 2nd core.
# --------------------------------------------------------------------------
def _fused_conv_kernel_train(idx_ref, keep_ref, means_ref, sigmas_ref, vals_ref,
                             x0_ref, out_ref, xbuf, dma_sem):
    l = pl.program_id(0)                 # layer (sequential dependency)
    r = pl.program_id(1)                 # output-row tile within the layer
    tm = out_ref.shape[1]                # rows per tile
    n_rows = xbuf.shape[1]               # in_num (columns of A, rows of x)
    k = means_ref.shape[1]               # gaussians per output row
    n_idx = idx_ref.shape[2]             # sampled integer tuples per row

    # ---- layer-0 prologue: one manual DMA of x0 (bf16, HBM) into slot 0 ----
    # (single-buffered on purpose; the auto-pipeliner would double-buffer it)
    @pl.when(jnp.logical_and(l == 0, r == 0))
    def _():
        cp = pltpu.make_async_copy(x0_ref, xbuf.at[0], dma_sem)
        cp.start()
        cp.wait()

    src = l % 2                          # ping-pong: read slot
    dst = (l + 1) % 2                    # ping-pong: write slot

    # ---- per-edge weights: densities + dedup + normalize + value weighting -
    # TODO(synk): re-lay idx/keep as (n_idx, tm) so the 128-multiple tm dim
    # sits in lanes (better EUP/VPU occupancy for this phase).
    idx = idx_ref[0]                     # (tm, n_idx) f32 integer tuples
    keep = keep_ref[0]                   # (tm, n_idx) 1.0 keep / 0.0 duplicate
    means = means_ref[...]               # (tm, k)
    sigmas = sigmas_ref[...]             # (tm, k)
    vals = vals_ref[...]                 # (tm, k)

    w = None
    for kk in range(k):                  # k static & small: unrolled
        mu = means[:, kk:kk + 1]         # (tm, 1)
        sg = sigmas[:, kk:kk + 1]
        vv = vals[:, kk:kk + 1]
        diff = idx - mu
        scale = -0.5 / (EPSILON + sg)                       # exact, per-row column
        dens = jnp.exp(diff * diff * scale) * keep          # props[dups] = 0
        denom = jnp.sum(dens, axis=1, keepdims=True)
        # divide -> EUP reciprocal (free slot), guarded against underflow
        contrib = dens * (vv * pl.reciprocal(denom + EPSILON, approx=True))
        w = contrib if w is None else w + contrib

    # ---- self-loop removal fused in-kernel (exact int32 compare) -----------
    idx_i = idx.astype(jnp.int32)
    row_ids = r * tm + lax.broadcasted_iota(jnp.int32, (tm, 1), 0)
    w = jnp.where(idx_i == row_ids, 0.0, w)

    # ---- build the A row-block in registers/VMEM (no HBM scatter) ----------
    # Duplicate (row, col) pairs sum, matching sparse scatter-add semantics.
    # f32 accumulate, initialized from edge 0 (no extra zeros pass), single
    # bf16 cast at the end.
    # TODO(synk): on v6e/v7x a bf16 compare/select/add would ~2x VALU
    # throughput on this (binding) loop; kept f32 for v5e portability.
    col_iota = lax.broadcasted_iota(jnp.int32, (tm, n_rows), 1)
    a_blk = jnp.where(col_iota == idx_i[:, 0:1], w[:, 0:1], 0.0)
    for j in range(1, n_idx):            # n_idx static & small: unrolled
        a_blk = a_blk + jnp.where(col_iota == idx_i[:, j:j + 1], w[:, j:j + 1], 0.0)
    a_bf = a_blk.astype(jnp.bfloat16)

    # ---- MXU: out rows = A_blk @ x  (bf16 inputs, f32 accumulation) --------
    y = jnp.dot(a_bf, xbuf[src], preferred_element_type=jnp.float32)

    out_ref[0] = y                                   # lane-dense f32 (e padded to 128)
    start = r * tm
    if tm % 8 == 0:
        start = pl.multiple_of(start, 8)
    xbuf[dst, pl.ds(start, tm), :] = y.astype(jnp.bfloat16)   # feeds next layer (bf16)


def _fused_conv_kernel_eval(idx_ref, vals_ref, x0_ref, out_ref, xbuf, a_cache,
                            dma_sem):
    l = pl.program_id(0)
    r = pl.program_id(1)
    tm = out_ref.shape[1]
    n_rows = xbuf.shape[1]
    k = idx_ref.shape[1]

    @pl.when(jnp.logical_and(l == 0, r == 0))
    def _():
        cp = pltpu.make_async_copy(x0_ref, xbuf.at[0], dma_sem)
        cp.start()
        cp.wait()

    src = l % 2
    dst = (l + 1) % 2
    start = r * tm
    if tm % 8 == 0:
        start = pl.multiple_of(start, 8)

    # A is identical for every layer in eval: build it once (layer 0) and cache
    # it in bf16 VMEM; deeper layers are pure MXU matmuls.
    @pl.when(l == 0)
    def _():
        idx_i = idx_ref[...].astype(jnp.int32)       # (tm, k) round(means)
        w = vals_ref[...]                            # (tm, k)
        row_ids = r * tm + lax.broadcasted_iota(jnp.int32, (tm, 1), 0)
        w = jnp.where(idx_i == row_ids, 0.0, w)      # self-loop removal
        col_iota = lax.broadcasted_iota(jnp.int32, (tm, n_rows), 1)
        a_blk = jnp.where(col_iota == idx_i[:, 0:1], w[:, 0:1], 0.0)
        for j in range(1, k):
            a_blk = a_blk + jnp.where(col_iota == idx_i[:, j:j + 1], w[:, j:j + 1], 0.0)
        a_cache[pl.ds(start, tm), :] = a_blk.astype(jnp.bfloat16)

    a_bf = a_cache[pl.ds(start, tm), :]
    y = jnp.dot(a_bf, xbuf[src], preferred_element_type=jnp.float32)
    out_ref[0] = y
    xbuf[dst, pl.ds(start, tm), :] = y.astype(jnp.bfloat16)


# --------------------------------------------------------------------------
# JAX glue: sampling / sort-based dedup (no clean in-kernel Pallas equivalent)
# --------------------------------------------------------------------------
def generate_integer_tuples(key, means, in_num, region, radd, gadd):
    """means: (c, k).  Returns (c, k*(2 + radd + gadd)) int32 index tuples (rank 1)."""
    c, k = means.shape
    neighbor = jnp.stack([jnp.floor(means), jnp.ceil(means)], axis=2)       # (c,k,2)
    key_r, key_g = jax.random.split(key)
    rng = float(in_num)
    rrng = float(region)
    rr = jax.random.uniform(key_r, (c, k, radd), dtype=jnp.float32) * (1.0 - EPSILON)
    mns = jnp.round(means)[:, :, None]
    lower = mns - rrng * 0.5
    upper = mns + rrng * 0.5
    lower = jnp.where(lower < 0.0, 0.0, lower)
    lower = jnp.where(upper > rng, rng - rrng, lower)
    rr = (rr * rrng + lower).astype(jnp.int32)                              # (c,k,radd)
    g = (jax.random.uniform(key_g, (c, k, gadd), dtype=jnp.float32)
         * (1.0 - EPSILON) * rng).astype(jnp.int32)                         # (c,k,gadd)
    ints = jnp.concatenate([neighbor.astype(jnp.int32), rr, g], axis=2)
    return ints.reshape(c, -1)


def duplicates_mask(tuples):
    """tuples: (c, n_idx) int32 rank-1 tuples.  True marks all-but-one of repeats."""
    # TODO(synk): sort-based dedup stays in plain JAX; no clean Pallas sort on TPU.
    # rank == 1 -> the index itself is the dedup key (no (t+1)**prime overflow).
    sort_idx = jnp.argsort(tuples, axis=1)
    sorted_vals = jnp.take_along_axis(tuples, sort_idx, axis=1)
    unsort_idx = jnp.argsort(sort_idx, axis=1)
    eq = sorted_vals[:, 1:] == sorted_vals[:, :-1]
    zs = jnp.zeros((tuples.shape[0], 1), dtype=bool)
    mask = jnp.concatenate([zs, eq], axis=1)
    return jnp.take_along_axis(mask, unsort_idx, axis=1)


# --------------------------------------------------------------------------
# VMEM-budget-aware row-tile selection + explicit vmem limit.
# --------------------------------------------------------------------------
def _tile_vmem_bytes(tm, n, e_pad, n_idx, k):
    return (2 * tm * e_pad * 4            # out block (f32, double-buffered)
            + 2 * 2 * tm * n_idx * 4      # idx + keep blocks (double-buffered)
            + 2 * 3 * tm * k * 4          # means / sigmas / values blocks
            + tm * n * 4 + tm * n * 2     # A-block accumulator (f32) + bf16 copy
            + 2 * tm * e_pad * 4)         # y intermediate headroom


def _pick_row_tile(c, n, e_pad, n_idx, k, resident_bytes,
                   budget_bytes=40 * 1024 * 1024):
    # NOTE: on v5e a 128-row tile matches the 4x128x128 MXU better than 256.
    cands = [t for t in (256, 128, 64, 32, 16, 8) if c % t == 0] or [c]
    for tm in cands:
        if resident_bytes + _tile_vmem_bytes(tm, n, e_pad, n_idx, k) <= budget_bytes:
            return tm
    return cands[-1]


# --------------------------------------------------------------------------
# ConvModel forward: depth-1 applications of x <- A(params, key_l) @ x,
# all layers fused into a single pallas_call.
# --------------------------------------------------------------------------
def conv_model_forward(key, params, x, *, k, radd, gadd, region, min_sigma=0.0,
                       depth=1, train=True, sigma_scale=0.2, fix_value=True):
    n, e = x.shape
    assert n < 2 ** 24, "indices must be exactly representable in f32"
    num_layers = depth - 1
    if num_layers <= 0:
        return []

    # ---- hyper(): evaluate the hypernetwork (tiny, plain JAX) -------------
    means = jax.nn.sigmoid(params[:, 0]) * (n - 1.0)                        # (k*n,)
    sigmas = jax.nn.softplus(params[:, 1] + SIGMA_BOOST) + EPSILON
    sigmas = sigmas * float(n) * sigma_scale + min_sigma
    values = params[:, 2]
    if fix_value:
        values = values * 0.0 + 1.0 / k
    c = n
    means = means.reshape(c, k).astype(jnp.float32)
    sigmas = sigmas.reshape(c, k).astype(jnp.float32)
    values = values.reshape(c, k).astype(jnp.float32)

    # ---- lane-dense output: pad feature dim to a multiple of 128 (once) ---
    e_pad = ((e + 127) // 128) * 128
    x_pad = x.astype(jnp.float32)
    if e_pad != e:
        x_pad = jnp.pad(x_pad, ((0, 0), (0, e_pad - e)))
    # Resident x lives in bf16 for the whole multi-layer chain (deliberate
    # precision change; MXU accumulates in f32).
    x0_bf = x_pad.astype(jnp.bfloat16)

    grid_sem = pltpu.CompilerParams  # alias to keep lines short

    if train:
        # ---- per-layer integer-tuple sampling + duplicate masks (plain JAX)
        keys = jax.random.split(key, num_layers)
        idx_layers, keep_layers = [], []
        for l in range(num_layers):
            idx_l = generate_integer_tuples(keys[l], means, n, region, radd, gadd)
            keep_l = 1.0 - duplicates_mask(idx_l).astype(jnp.float32)
            idx_layers.append(idx_l.astype(jnp.float32))
            keep_layers.append(keep_l)
        idx_all = jnp.stack(idx_layers)                 # (L, c, n_idx) f32
        keep_all = jnp.stack(keep_layers)               # (L, c, n_idx) f32
        n_idx = idx_all.shape[2]

        resident = 2 * n * e_pad * 2                    # bf16 ping-pong x
        tm = _pick_row_tile(c, n, e_pad, n_idx, k, resident)
        need = resident + _tile_vmem_bytes(tm, n, e_pad, n_idx, k)
        vmem_limit = int(min(max(2 * need, 32 << 20), 60 << 20))
        grid = (num_layers, pl.cdiv(c, tm))

        out = pl.pallas_call(
            _fused_conv_kernel_train,
            out_shape=jax.ShapeDtypeStruct((num_layers, n, e_pad), jnp.float32),
            grid=grid,
            in_specs=[
                pl.BlockSpec((1, tm, n_idx), lambda l, r: (l, r, 0)),   # idx   (per layer)
                pl.BlockSpec((1, tm, n_idx), lambda l, r: (l, r, 0)),   # keep  (per layer)
                pl.BlockSpec((tm, k), lambda l, r: (r, 0)),             # means (shared)
                pl.BlockSpec((tm, k), lambda l, r: (r, 0)),             # sigmas
                pl.BlockSpec((tm, k), lambda l, r: (r, 0)),             # values
                pl.BlockSpec(memory_space=pl.ANY),                      # x0 (bf16, HBM)
            ],
            out_specs=pl.BlockSpec((1, tm, e_pad), lambda l, r: (l, r, 0)),
            scratch_shapes=[
                pltpu.VMEM((2, n, e_pad), jnp.bfloat16),   # bf16 ping-pong resident x
                pltpu.SemaphoreType.DMA(()),               # x0 prologue DMA
            ],
            # depth axis is a true sequential dependency; row axis shares the
            # resident-x scratch -> both stay sequential.
            compiler_params=grid_sem(
                dimension_semantics=("arbitrary", "arbitrary"),
                vmem_limit_bytes=vmem_limit),
        )(idx_all, keep_all, means, sigmas, values, x0_bf)
    else:
        # Eval: idx/values identical for every layer; no keep/means/sigmas DMA.
        idx_eval = jnp.round(means).astype(jnp.float32)                 # (c, k)

        resident = 2 * n * e_pad * 2 + c * n * 2       # + cached bf16 dense A
        tm = _pick_row_tile(c, n, e_pad, k, k, resident)
        need = resident + _tile_vmem_bytes(tm, n, e_pad, k, k)
        vmem_limit = int(min(max(2 * need, 32 << 20), 60 << 20))
        grid = (num_layers, pl.cdiv(c, tm))

        out = pl.pallas_call(
            _fused_conv_kernel_eval,
            out_shape=jax.ShapeDtypeStruct((num_layers, n, e_pad), jnp.float32),
            grid=grid,
            in_specs=[
                pl.BlockSpec((tm, k), lambda l, r: (r, 0)),             # idx = round(means)
                pl.BlockSpec((tm, k), lambda l, r: (r, 0)),             # values
                pl.BlockSpec(memory_space=pl.ANY),                      # x0 (bf16, HBM)
            ],
            out_specs=pl.BlockSpec((1, tm, e_pad), lambda l, r: (l, r, 0)),
            scratch_shapes=[
                pltpu.VMEM((2, n, e_pad), jnp.bfloat16),   # bf16 ping-pong resident x
                pltpu.VMEM((c, n), jnp.bfloat16),          # cached dense A (layer 0)
                pltpu.SemaphoreType.DMA(()),
            ],
            compiler_params=grid_sem(
                dimension_semantics=("arbitrary", "arbitrary"),
                vmem_limit_bytes=vmem_limit),
        )(idx_eval, values, x0_bf)

    out = out[:, :, :e]                                 # drop feature padding once
    return [out[l] for l in range(num_layers)]


# --------------------------------------------------------------------------
# Pure-JAX reference (dense scatter-add) for correctness validation.
# --------------------------------------------------------------------------
def _reference_forward(key, params, x, *, k, radd, gadd, region, min_sigma=0.0,
                       depth=1, train=True, sigma_scale=0.2, fix_value=True):
    n, e = x.shape
    means = jax.nn.sigmoid(params[:, 0]) * (n - 1.0)
    sigmas = (jax.nn.softplus(params[:, 1] + SIGMA_BOOST) + EPSILON) * n * sigma_scale + min_sigma
    values = params[:, 2]
    if fix_value:
        values = values * 0.0 + 1.0 / k
    c = n
    means = means.reshape(c, k)
    sigmas = sigmas.reshape(c, k)
    values = values.reshape(c, k)
    num_layers = depth - 1
    keys = jax.random.split(key, num_layers)
    outs = []
    xc = x.astype(jnp.float32)
    rows = jnp.arange(c)[:, None]
    for l in range(num_layers):
        if train:
            idx = generate_integer_tuples(keys[l], means, n, region, radd, gadd)
            keep = 1.0 - duplicates_mask(idx).astype(jnp.float32)
            idxf = idx.astype(jnp.float32)
            diff = idxf[:, :, None] - means[:, None, :]
            dens = jnp.exp(-0.5 * diff * diff / (EPSILON + sigmas[:, None, :]))
            dens = dens * keep[:, :, None]
            dens = dens / (dens.sum(axis=1, keepdims=True) + EPSILON)
            w = (dens * values[:, None, :]).sum(axis=2)
        else:
            idx = jnp.round(means).astype(jnp.int32)
            w = values
        w = jnp.where(idx == rows, 0.0, w)                       # self-loop removal
        A = jnp.zeros((c, n), jnp.float32)
        A = A.at[jnp.repeat(jnp.arange(c), idx.shape[1]),
                 idx.reshape(-1)].add(w.reshape(-1))
        xc = A @ xc
        outs.append(xc)
    return outs


# --------------------------------------------------------------------------
if __name__ == "__main__":
    key = jax.random.PRNGKey(0)
    n, e = 16, 32                     # data_size = (n, e)
    k, radd, gadd, region = 2, 2, 2, 8
    depth = 3                         # reference loop range(1, depth): depth-1 layers

    kp, kx, ks = jax.random.split(key, 3)
    # Parameter(torch.randn(k * out_num, 3)) — deterministic synthetic init
    params = jax.random.normal(kp, (k * n, 3), dtype=jnp.float32)
    x = jax.random.normal(kx, (n, e), dtype=jnp.float32)

    # --- train path ---
    outs = conv_model_forward(ks, params, x, k=k, radd=radd, gadd=gadd,
                              region=region, depth=depth, train=True)
    outs = [jax.block_until_ready(o) for o in outs]
    assert len(outs) == depth - 1
    assert all(o.shape == (n, e) and o.dtype == jnp.float32 for o in outs)
    assert all(bool(jnp.all(jnp.isfinite(o))) for o in outs)

    refs = _reference_forward(ks, params, x, k=k, radd=radd, gadd=gadd,
                              region=region, depth=depth, train=True)
    for o, r in zip(outs, refs):
        assert bool(jnp.allclose(o, r, rtol=5e-2, atol=5e-2)), "train mismatch"

    # --- eval path ---
    outs_e = conv_model_forward(ks, params, x, k=k, radd=radd, gadd=gadd,
                                region=region, depth=depth, train=False)
    outs_e = [jax.block_until_ready(o) for o in outs_e]
    refs_e = _reference_forward(ks, params, x, k=k, radd=radd, gadd=gadd,
                                region=region, depth=depth, train=False)
    for o, r in zip(outs_e, refs_e):
        assert o.shape == (n, e) and bool(jnp.all(jnp.isfinite(o)))
        assert bool(jnp.allclose(o, r, rtol=5e-2, atol=5e-2)), "eval mismatch"

    print("KERNEL_OK")
</pallas_src>

<mosaic_0001>
module attributes {stable_mosaic.version = 11 : i64} {
  func.func @_fused_conv_kernel_train(%arg0: i32, %arg1: i32, %arg2: memref<1x16x12xf32, #tpu.memory_space<vmem>>, %arg3: memref<1x16x12xf32, #tpu.memory_space<vmem>>, %arg4: memref<16x2xf32, #tpu.memory_space<vmem>>, %arg5: memref<16x2xf32, #tpu.memory_space<vmem>>, %arg6: memref<16x2xf32, #tpu.memory_space<vmem>>, %arg7: memref<16x128xbf16, #tpu.memory_space<any>>, %arg8: memref<1x16x128xf32, #tpu.memory_space<vmem>>, %arg9: memref<2x16x128xbf16, #tpu.memory_space<vmem>>, %arg10: memref<!tpu.dma_semaphore, #tpu.memory_space<semaphore_mem>>) attributes {dimension_semantics = [#tpu.dimension_semantics<arbitrary>, #tpu.dimension_semantics<arbitrary>], iteration_bounds = array<i64: 2, 1>, scalar_prefetch = 0 : i64, scratch_operands = 2 : i64, tpu.core_type = #tpu.core_type<tc>, window_params = [{transform_indices = @transform_0, window_bounds = array<i64: 1, 16, 12>}, {transform_indices = @transform_1, window_bounds = array<i64: 1, 16, 12>}, {transform_indices = @transform_2, window_bounds = array<i64: 16, 2>}, {transform_indices = @transform_3, window_bounds = array<i64: 16, 2>}, {transform_indices = @transform_4, window_bounds = array<i64: 16, 2>}, {}, {transform_indices = @transform_6, window_bounds = array<i64: 1, 16, 128>}]} {
    %c0_i32 = arith.constant 0 : i32
    %0 = arith.cmpi eq, %arg0, %c0_i32 : i32
    %c0_i32_0 = arith.constant 0 : i32
    %1 = arith.cmpi eq, %arg1, %c0_i32_0 : i32
    %2 = arith.andi %0, %1 : i1
    %3 = arith.extui %2 : i1 to i32
    %c0_i32_1 = arith.constant 0 : i32
    %4 = arith.cmpi ne, %3, %c0_i32_1 : i32
    scf.if %4 {
      %c0_i32_52 = arith.constant 0 : i32
      %c0_i32_53 = arith.constant 0 : i32
      %c0_i32_54 = arith.constant 0 : i32
      %211 = tpu.memref_slice %arg9[%c0_i32_52, %c0_i32_53, %c0_i32_54] : memref<2x16x128xbf16, #tpu.memory_space<vmem>> -> memref<1x16x128xbf16, #tpu.memory_space<vmem>>
      %212 = tpu.memref_squeeze %211 : memref<1x16x128xbf16, #tpu.memory_space<vmem>> -> memref<16x128xbf16, #tpu.memory_space<vmem>>
      tpu.enqueue_dma source(%arg7 : memref<16x128xbf16, #tpu.memory_space<any>>) target(%212 : memref<16x128xbf16, #tpu.memory_space<vmem>>) target_semaphore(%arg10 : memref<!tpu.dma_semaphore, #tpu.memory_space<semaphore_mem>>)
      %c0_i32_55 = arith.constant 0 : i32
      %c0_i32_56 = arith.constant 0 : i32
      %c0_i32_57 = arith.constant 0 : i32
      %213 = tpu.memref_slice %arg9[%c0_i32_55, %c0_i32_56, %c0_i32_57] : memref<2x16x128xbf16, #tpu.memory_space<vmem>> -> memref<1x16x128xbf16, #tpu.memory_space<vmem>>
      %214 = tpu.memref_squeeze %213 : memref<1x16x128xbf16, #tpu.memory_space<vmem>> -> memref<16x128xbf16, #tpu.memory_space<vmem>>
      tpu.wait_dma2 semaphore(%arg10 : memref<!tpu.dma_semaphore, #tpu.memory_space<semaphore_mem>>) src(%arg7 : memref<16x128xbf16, #tpu.memory_space<any>>) dst(%214 : memref<16x128xbf16, #tpu.memory_space<vmem>>)
    } else {
    }
    %c2_i32 = arith.constant 2 : i32
    %c0_i32_2 = arith.constant 0 : i32
    %5 = arith.cmpi eq, %c2_i32, %c0_i32_2 : i32
    %c1_i32 = arith.constant 1 : i32
    %6 = arith.select %5, %c1_i32, %c2_i32 : i32
    %7 = arith.remsi %arg0, %6 : i32
    %c0_i32_3 = arith.constant 0 : i32
    %8 = arith.cmpi ne, %7, %c0_i32_3 : i32
    %c0_i32_4 = arith.constant 0 : i32
    %9 = arith.cmpi slt, %7, %c0_i32_4 : i32
    %c0_i32_5 = arith.constant 0 : i32
    %10 = arith.cmpi slt, %6, %c0_i32_5 : i32
    %11 = arith.xori %9, %10 : i1
    %12 = arith.andi %11, %8 : i1
    %13 = arith.addi %7, %6 : i32
    %14 = arith.select %12, %13, %7 : i32
    %c1_i32_6 = arith.constant 1 : i32
    %15 = arith.addi %arg0, %c1_i32_6 : i32
    %c2_i32_7 = arith.constant 2 : i32
    %c0_i32_8 = arith.constant 0 : i32
    %16 = arith.cmpi eq, %c2_i32_7, %c0_i32_8 : i32
    %c1_i32_9 = arith.constant 1 : i32
    %17 = arith.select %16, %c1_i32_9, %c2_i32_7 : i32
    %18 = arith.remsi %15, %17 : i32
    %c0_i32_10 = arith.constant 0 : i32
    %19 = arith.cmpi ne, %18, %c0_i32_10 : i32
    %c0_i32_11 = arith.constant 0 : i32
    %20 = arith.cmpi slt, %18, %c0_i32_11 : i32
    %c0_i32_12 = arith.constant 0 : i32
    %21 = arith.cmpi slt, %17, %c0_i32_12 : i32
    %22 = arith.xori %20, %21 : i1
    %23 = arith.andi %22, %19 : i1
    %24 = arith.addi %18, %17 : i32
    %25 = arith.select %23, %24, %18 : i32
    %c0 = arith.constant 0 : index
    %c0_13 = arith.constant 0 : index
    %c0_14 = arith.constant 0 : index
    %26 = vector.load %arg2[%c0, %c0_13, %c0_14] : memref<1x16x12xf32, #tpu.memory_space<vmem>>, vector<1x16x12xf32>
    %27 = vector.shape_cast %26 : vector<1x16x12xf32> to vector<16x12xf32>
    %c0_15 = arith.constant 0 : index
    %c0_16 = arith.constant 0 : index
    %c0_17 = arith.constant 0 : index
    %28 = vector.load %arg3[%c0_15, %c0_16, %c0_17] : memref<1x16x12xf32, #tpu.memory_space<vmem>>, vector<1x16x12xf32>
    %29 = vector.shape_cast %28 : vector<1x16x12xf32> to vector<16x12xf32>
    %c0_18 = arith.constant 0 : index
    %c0_19 = arith.constant 0 : index
    %30 = vector.load %arg4[%c0_18, %c0_19] : memref<16x2xf32, #tpu.memory_space<vmem>>, vector<16x2xf32>
    %c0_20 = arith.constant 0 : index
    %c0_21 = arith.constant 0 : index
    %31 = vector.load %arg5[%c0_20, %c0_21] : memref<16x2xf32, #tpu.memory_space<vmem>>, vector<16x2xf32>
    %c0_22 = arith.constant 0 : index
    %c0_23 = arith.constant 0 : index
    %32 = vector.load %arg6[%c0_22, %c0_23] : memref<16x2xf32, #tpu.memory_space<vmem>>, vector<16x2xf32>
    %33 = vector.extract_strided_slice %30 {offsets = [0, 0], sizes = [16, 1], strides = [1, 1]} : vector<16x2xf32> to vector<16x1xf32>
    %34 = vector.extract_strided_slice %31 {offsets = [0, 0], sizes = [16, 1], strides = [1, 1]} : vector<16x2xf32> to vector<16x1xf32>
    %35 = vector.extract_strided_slice %32 {offsets = [0, 0], sizes = [16, 1], strides = [1, 1]} : vector<16x2xf32> to vector<16x1xf32>
    %36 = vector.broadcast %33 : vector<16x1xf32> to vector<16x12xf32>
    %37 = arith.subf %27, %36 : vector<16x12xf32>
    %cst = arith.constant 9.99999997E-7 : f32
    %38 = vector.broadcast %cst : f32 to vector<16x1xf32>
    %39 = arith.addf %38, %34 : vector<16x1xf32>
    %cst_24 = arith.constant -5.000000e-01 : f32
    %40 = vector.broadcast %cst_24 : f32 to vector<16x1xf32>
    %41 = arith.divf %40, %39 : vector<16x1xf32>
    %42 = arith.mulf %37, %37 : vector<16x12xf32>
    %43 = vector.broadcast %41 : vector<16x1xf32> to vector<16x12xf32>
    %44 = arith.mulf %42, %43 : vector<16x12xf32>
    %45 = math.exp %44 : vector<16x12xf32>
    %46 = arith.mulf %45, %29 : vector<16x12xf32>
    %cst_25 = arith.constant dense<0.000000e+00> : vector<16xf32>
    %47 = vector.multi_reduction <add>, %46, %cst_25 [1] : vector<16x12xf32> to vector<16xf32>
    %48 = vector.shape_cast %47 : vector<16xf32> to vector<16x1xf32>
    %cst_26 = arith.constant 9.99999997E-7 : f32
    %49 = vector.broadcast %cst_26 : f32 to vector<16x1xf32>
    %50 = arith.addf %48, %49 : vector<16x1xf32>
    %51 = tpu.reciprocal %50 {approx = true} : vector<16x1xf32> -> vector<16x1xf32>
    %52 = arith.mulf %35, %51 : vector<16x1xf32>
    %53 = vector.broadcast %52 : vector<16x1xf32> to vector<16x12xf32>
    %54 = arith.mulf %46, %53 : vector<16x12xf32>
    %55 = vector.extract_strided_slice %30 {offsets = [0, 1], sizes = [16, 1], strides = [1, 1]} : vector<16x2xf32> to vector<16x1xf32>
    %56 = vector.extract_strided_slice %31 {offsets = [0, 1], sizes = [16, 1], strides = [1, 1]} : vector<16x2xf32> to vector<16x1xf32>
    %57 = vector.extract_strided_slice %32 {offsets = [0, 1], sizes = [16, 1], strides = [1, 1]} : vector<16x2xf32> to vector<16x1xf32>
    %58 = vector.broadcast %55 : vector<16x1xf32> to vector<16x12xf32>
    %59 = arith.subf %27, %58 : vector<16x12xf32>
    %cst_27 = arith.constant 9.99999997E-7 : f32
    %60 = vector.broadcast %cst_27 : f32 to vector<16x1xf32>
    %61 = arith.addf %60, %56 : vector<16x1xf32>
    %cst_28 = arith.constant -5.000000e-01 : f32
    %62 = vector.broadcast %cst_28 : f32 to vector<16x1xf32>
    %63 = arith.divf %62, %61 : vector<16x1xf32>
    %64 = arith.mulf %59, %59 : vector<16x12xf32>
    %65 = vector.broadcast %63 : vector<16x1xf32> to vector<16x12xf32>
    %66 = arith.mulf %64, %65 : vector<16x12xf32>
    %67 = math.exp %66 : vector<16x12xf32>
    %68 = arith.mulf %67, %29 : vector<16x12xf32>
    %cst_29 = arith.constant dense<0.000000e+00> : vector<16xf32>
    %69 = vector.multi_reduction <add>, %68, %cst_29 [1] : vector<16x12xf32> to vector<16xf32>
    %70 = vector.shape_cast %69 : vector<16xf32> to vector<16x1xf32>
    %cst_30 = arith.constant 9.99999997E-7 : f32
    %71 = vector.broadcast %cst_30 : f32 to vector<16x1xf32>
    %72 = arith.addf %70, %71 : vector<16x1xf32>
    %73 = tpu.reciprocal %72 {approx = true} : vector<16x1xf32> -> vector<16x1xf32>
    %74 = arith.mulf %57, %73 : vector<16x1xf32>
    %75 = vector.broadcast %74 : vector<16x1xf32> to vector<16x12xf32>
    %76 = arith.mulf %68, %75 : vector<16x12xf32>
    %77 = arith.addf %54, %76 : vector<16x12xf32>
    %78 = arith.fptosi %27 : vector<16x12xf32> to vector<16x12xi32>
    %c16_i32 = arith.constant 16 : i32
    %79 = arith.muli %arg1, %c16_i32 : i32
    %80 = tpu.iota {dimensions = array<i32: 0>} : vector<16x1xi32>
    %81 = vector.broadcast %79 : i32 to vector<16x1xi32>
    %82 = arith.addi %81, %80 : vector<16x1xi32>
    %83 = vector.broadcast %82 : vector<16x1xi32> to vector<16x12xi32>
    %84 = arith.cmpi eq, %78, %83 : vector<16x12xi32>
    %cst_31 = arith.constant 0.000000e+00 : f32
    %85 = vector.broadcast %cst_31 : f32 to vector<16x12xf32>
    %86 = arith.select %84, %85, %77 : vector<16x12xi1>, vector<16x12xf32>
    %87 = tpu.iota {dimensions = array<i32: 1>} : vector<16x16xi32>
    %88 = vector.extract_strided_slice %78 {offsets = [0, 0], sizes = [16, 1], strides = [1, 1]} : vector<16x12xi32> to vector<16x1xi32>
    %89 = vector.broadcast %88 : vector<16x1xi32> to vector<16x16xi32>
    %90 = arith.cmpi eq, %87, %89 : vector<16x16xi32>
    %91 = vector.extract_strided_slice %86 {offsets = [0, 0], sizes = [16, 1], strides = [1, 1]} : vector<16x12xf32> to vector<16x1xf32>
    %cst_32 = arith.constant 0.000000e+00 : f32
    %92 = vector.shape_cast %91 : vector<16x1xf32> to vector<16x1xf32>
    %93 = vector.broadcast %92 : vector<16x1xf32> to vector<16x16xf32>
    %94 = vector.broadcast %cst_32 : f32 to vector<16x16xf32>
    %95 = arith.select %90, %93, %94 : vector<16x16xi1>, vector<16x16xf32>
    %96 = vector.extract_strided_slice %78 {offsets = [0, 1], sizes = [16, 1], strides = [1, 1]} : vector<16x12xi32> to vector<16x1xi32>
    %97 = vector.broadcast %96 : vector<16x1xi32> to vector<16x16xi32>
    %98 = arith.cmpi eq, %87, %97 : vector<16x16xi32>
    %99 = vector.extract_strided_slice %86 {offsets = [0, 1], sizes = [16, 1], strides = [1, 1]} : vector<16x12xf32> to vector<16x1xf32>
    %cst_33 = arith.constant 0.000000e+00 : f32
    %100 = vector.shape_cast %99 : vector<16x1xf32> to vector<16x1xf32>
    %101 = vector.broadcast %100 : vector<16x1xf32> to vector<16x16xf32>
    %102 = vector.broadcast %cst_33 : f32 to vector<16x16xf32>
    %103 = arith.select %98, %101, %102 : vector<16x16xi1>, vector<16x16xf32>
    %104 = arith.addf %95, %103 : vector<16x16xf32>
    %105 = vector.extract_strided_slice %78 {offsets = [0, 2], sizes = [16, 1], strides = [1, 1]} : vector<16x12xi32> to vector<16x1xi32>
    %106 = vector.broadcast %105 : vector<16x1xi32> to vector<16x16xi32>
    %107 = arith.cmpi eq, %87, %106 : vector<16x16xi32>
    %108 = vector.extract_strided_slice %86 {offsets = [0, 2], sizes = [16, 1], strides = [1, 1]} : vector<16x12xf32> to vector<16x1xf32>
    %cst_34 = arith.constant 0.000000e+00 : f32
    %109 = vector.shape_cast %108 : vector<16x1xf32> to vector<16x1xf32>
    %110 = vector.broadcast %109 : vector<16x1xf32> to vector<16x16xf32>
    %111 = vector.broadcast %cst_34 : f32 to vector<16x16xf32>
    %112 = arith.select %107, %110, %111 : vector<16x16xi1>, vector<16x16xf32>
    %113 = arith.addf %104, %112 : vector<16x16xf32>
    %114 = vector.extract_strided_slice %78 {offsets = [0, 3], sizes = [16, 1], strides = [1, 1]} : vector<16x12xi32> to vector<16x1xi32>
    %115 = vector.broadcast %114 : vector<16x1xi32> to vector<16x16xi32>
    %116 = arith.cmpi eq, %87, %115 : vector<16x16xi32>
    %117 = vector.extract_strided_slice %86 {offsets = [0, 3], sizes = [16, 1], strides = [1, 1]} : vector<16x12xf32> to vector<16x1xf32>
    %cst_35 = arith.constant 0.000000e+00 : f32
    %118 = vector.shape_cast %117 : vector<16x1xf32> to vector<16x1xf32>
    %119 = vector.broadcast %118 : vector<16x1xf32> to vector<16x16xf32>
    %120 = vector.broadcast %cst_35 : f32 to vector<16x16xf32>
    %121 = arith.select %116, %119, %120 : vector<16x16xi1>, vector<16x16xf32>
    %122 = arith.addf %113, %121 : vector<16x16xf32>
    %123 = vector.extract_strided_slice %78 {offsets = [0, 4], sizes = [16, 1], strides = [1, 1]} : vector<16x12xi32> to vector<16x1xi32>
    %124 = vector.broadcast %123 : vector<16x1xi32> to vector<16x16xi32>
    %125 = arith.cmpi eq, %87, %124 : vector<16x16xi32>
    %126 = vector.extract_strided_slice %86 {offsets = [0, 4], sizes = [16, 1], strides = [1, 1]} : vector<16x12xf32> to vector<16x1xf32>
    %cst_36 = arith.constant 0.000000e+00 : f32
    %127 = vector.shape_cast %126 : vector<16x1xf32> to vector<16x1xf32>
    %128 = vector.broadcast %127 : vector<16x1xf32> to vector<16x16xf32>
    %129 = vector.broadcast %cst_36 : f32 to vector<16x16xf32>
    %130 = arith.select %125, %128, %129 : vector<16x16xi1>, vector<16x16xf32>
    %131 = arith.addf %122, %130 : vector<16x16xf32>
    %132 = vector.extract_strided_slice %78 {offsets = [0, 5], sizes = [16, 1], strides = [1, 1]} : vector<16x12xi32> to vector<16x1xi32>
    %133 = vector.broadcast %132 : vector<16x1xi32> to vector<16x16xi32>
    %134 = arith.cmpi eq, %87, %133 : vector<16x16xi32>
    %135 = vector.extract_strided_slice %86 {offsets = [0, 5], sizes = [16, 1], strides = [1, 1]} : vector<16x12xf32> to vector<16x1xf32>
    %cst_37 = arith.constant 0.000000e+00 : f32
    %136 = vector.shape_cast %135 : vector<16x1xf32> to vector<16x1xf32>
    %137 = vector.broadcast %136 : vector<16x1xf32> to vector<16x16xf32>
    %138 = vector.broadcast %cst_37 : f32 to vector<16x16xf32>
    %139 = arith.select %134, %137, %138 : vector<16x16xi1>, vector<16x16xf32>
    %140 = arith.addf %131, %139 : vector<16x16xf32>
    %141 = vector.extract_strided_slice %78 {offsets = [0, 6], sizes = [16, 1], strides = [1, 1]} : vector<16x12xi32> to vector<16x1xi32>
    %142 = vector.broadcast %141 : vector<16x1xi32> to vector<16x16xi32>
    %143 = arith.cmpi eq, %87, %142 : vector<16x16xi32>
    %144 = vector.extract_strided_slice %86 {offsets = [0, 6], sizes = [16, 1], strides = [1, 1]} : vector<16x12xf32> to vector<16x1xf32>
    %cst_38 = arith.constant 0.000000e+00 : f32
    %145 = vector.shape_cast %144 : vector<16x1xf32> to vector<16x1xf32>
    %146 = vector.broadcast %145 : vector<16x1xf32> to vector<16x16xf32>
    %147 = vector.broadcast %cst_38 : f32 to vector<16x16xf32>
    %148 = arith.select %143, %146, %147 : vector<16x16xi1>, vector<16x16xf32>
    %149 = arith.addf %140, %148 : vector<16x16xf32>
    %150 = vector.extract_strided_slice %78 {offsets = [0, 7], sizes = [16, 1], strides = [1, 1]} : vector<16x12xi32> to vector<16x1xi32>
    %151 = vector.broadcast %150 : vector<16x1xi32> to vector<16x16xi32>
    %152 = arith.cmpi eq, %87, %151 : vector<16x16xi32>
    %153 = vector.extract_strided_slice %86 {offsets = [0, 7], sizes = [16, 1], strides = [1, 1]} : vector<16x12xf32> to vector<16x1xf32>
    %cst_39 = arith.constant 0.000000e+00 : f32
    %154 = vector.shape_cast %153 : vector<16x1xf32> to vector<16x1xf32>
    %155 = vector.broadcast %154 : vector<16x1xf32> to vector<16x16xf32>
    %156 = vector.broadcast %cst_39 : f32 to vector<16x16xf32>
    %157 = arith.select %152, %155, %156 : vector<16x16xi1>, vector<16x16xf32>
    %158 = arith.addf %149, %157 : vector<16x16xf32>
    %159 = vector.extract_strided_slice %78 {offsets = [0, 8], sizes = [16, 1], strides = [1, 1]} : vector<16x12xi32> to vector<16x1xi32>
    %160 = vector.broadcast %159 : vector<16x1xi32> to vector<16x16xi32>
    %161 = arith.cmpi eq, %87, %160 : vector<16x16xi32>
    %162 = vector.extract_strided_slice %86 {offsets = [0, 8], sizes = [16, 1], strides = [1, 1]} : vector<16x12xf32> to vector<16x1xf32>
    %cst_40 = arith.constant 0.000000e+00 : f32
    %163 = vector.shape_cast %162 : vector<16x1xf32> to vector<16x1xf32>
    %164 = vector.broadcast %163 : vector<16x1xf32> to vector<16x16xf32>
    %165 = vector.broadcast %cst_40 : f32 to vector<16x16xf32>
    %166 = arith.select %161, %164, %165 : vector<16x16xi1>, vector<16x16xf32>
    %167 = arith.addf %158, %166 : vector<16x16xf32>
    %168 = vector.extract_strided_slice %78 {offsets = [0, 9], sizes = [16, 1], strides = [1, 1]} : vector<16x12xi32> to vector<16x1xi32>
    %169 = vector.broadcast %168 : vector<16x1xi32> to vector<16x16xi32>
    %170 = arith.cmpi eq, %87, %169 : vector<16x16xi32>
    %171 = vector.extract_strided_slice %86 {offsets = [0, 9], sizes = [16, 1], strides = [1, 1]} : vector<16x12xf32> to vector<16x1xf32>
    %cst_41 = arith.constant 0.000000e+00 : f32
    %172 = vector.shape_cast %171 : vector<16x1xf32> to vector<16x1xf32>
    %173 = vector.broadcast %172 : vector<16x1xf32> to vector<16x16xf32>
    %174 = vector.broadcast %cst_41 : f32 to vector<16x16xf32>
    %175 = arith.select %170, %173, %174 : vector<16x16xi1>, vector<16x16xf32>
    %176 = arith.addf %167, %175 : vector<16x16xf32>
    %177 = vector.extract_strided_slice %78 {offsets = [0, 10], sizes = [16, 1], strides = [1, 1]} : vector<16x12xi32> to vector<16x1xi32>
    %178 = vector.broadcast %177 : vector<16x1xi32> to vector<16x16xi32>
    %179 = arith.cmpi eq, %87, %178 : vector<16x16xi32>
    %180 = vector.extract_strided_slice %86 {offsets = [0, 10], sizes = [16, 1], strides = [1, 1]} : vector<16x12xf32> to vector<16x1xf32>
    %cst_42 = arith.constant 0.000000e+00 : f32
    %181 = vector.shape_cast %180 : vector<16x1xf32> to vector<16x1xf32>
    %182 = vector.broadcast %181 : vector<16x1xf32> to vector<16x16xf32>
    %183 = vector.broadcast %cst_42 : f32 to vector<16x16xf32>
    %184 = arith.select %179, %182, %183 : vector<16x16xi1>, vector<16x16xf32>
    %185 = arith.addf %176, %184 : vector<16x16xf32>
    %186 = vector.extract_strided_slice %78 {offsets = [0, 11], sizes = [16, 1], strides = [1, 1]} : vector<16x12xi32> to vector<16x1xi32>
    %187 = vector.broadcast %186 : vector<16x1xi32> to vector<16x16xi32>
    %188 = arith.cmpi eq, %87, %187 : vector<16x16xi32>
    %189 = vector.extract_strided_slice %86 {offsets = [0, 11], sizes = [16, 1], strides = [1, 1]} : vector<16x12xf32> to vector<16x1xf32>
    %cst_43 = arith.constant 0.000000e+00 : f32
    %190 = vector.shape_cast %189 : vector<16x1xf32> to vector<16x1xf32>
    %191 = vector.broadcast %190 : vector<16x1xf32> to vector<16x16xf32>
    %192 = vector.broadcast %cst_43 : f32 to vector<16x16xf32>
    %193 = arith.select %188, %191, %192 : vector<16x16xi1>, vector<16x16xf32>
    %194 = arith.addf %185, %193 : vector<16x16xf32>
    %195 = arith.truncf %194 : vector<16x16xf32> to vector<16x16xbf16>
    %196 = arith.index_cast %14 : i32 to index
    %c0_44 = arith.constant 0 : index
    %c0_45 = arith.constant 0 : index
    %197 = vector.load %arg9[%196, %c0_44, %c0_45] : memref<2x16x128xbf16, #tpu.memory_space<vmem>>, vector<1x16x128xbf16>
    %198 = vector.shape_cast %197 : vector<1x16x128xbf16> to vector<16x128xbf16>
    %cst_46 = arith.constant dense<0.000000e+00> : vector<16x128xf32>
    %199 = tpu.matmul %195, %198, %cst_46 {dimension_numbers = #tpu.dot_dimension_numbers<[1], [0], [0], [1], [0, 0, 1, 1], [], []>} : vector<16x16xbf16>, vector<16x128xbf16>, vector<16x128xf32> -> vector<16x128xf32>
    %c0_47 = arith.constant 0 : index
    %c0_48 = arith.constant 0 : index
    %c0_49 = arith.constant 0 : index
    %200 = vector.load %arg8[%c0_47, %c0_48, %c0_49] : memref<1x16x128xf32, #tpu.memory_space<vmem>>, vector<1x16x128xf32>
    %201 = vector.shape_cast %200 : vector<1x16x128xf32> to vector<16x128xf32>
    %202 = vector.shape_cast %199 : vector<16x128xf32> to vector<1x16x128xf32>
    tpu.vector_store %arg8[%c0_47, %c0_48, %c0_49], %202 {strides = array<i32>} : memref<1x16x128xf32, #tpu.memory_space<vmem>>, vector<1x16x128xf32>,
    %c16_i32_50 = arith.constant 16 : i32
    %203 = arith.muli %arg1, %c16_i32_50 : i32
    %204 = tpu.assume_multiple %203, 8 : i32
    %205 = arith.truncf %199 : vector<16x128xf32> to vector<16x128xbf16>
    %206 = arith.index_cast %25 : i32 to index
    %207 = arith.index_cast %204 : i32 to index
    %c0_51 = arith.constant 0 : index
    %208 = vector.load %arg9[%206, %207, %c0_51] : memref<2x16x128xbf16, #tpu.memory_space<vmem>>, vector<1x16x128xbf16>
    %209 = vector.shape_cast %208 : vector<1x16x128xbf16> to vector<16x128xbf16>
    %210 = vector.shape_cast %205 : vector<16x128xbf16> to vector<1x16x128xbf16>
    tpu.vector_store %arg9[%206, %207, %c0_51], %210 {strides = array<i32>} : memref<2x16x128xbf16, #tpu.memory_space<vmem>>, vector<1x16x128xbf16>,
    return
  }
  func.func @transform_0(%arg0: i32, %arg1: i32) -> (i32, i32, i32) {
    %c0_i32 = arith.constant 0 : i32
    %c0_i32_0 = arith.constant 0 : i32
    return %arg0, %arg1, %c0_i32 : i32, i32, i32
  }
  func.func @transform_1(%arg0: i32, %arg1: i32) -> (i32, i32, i32) {
    %c0_i32 = arith.constant 0 : i32
    %c0_i32_0 = arith.constant 0 : i32
    return %arg0, %arg1, %c0_i32 : i32, i32, i32
  }
  func.func @transform_2(%arg0: i32, %arg1: i32) -> (i32, i32) {
    %c0_i32 = arith.constant 0 : i32
    %c0_i32_0 = arith.constant 0 : i32
    return %arg1, %c0_i32 : i32, i32
  }
  func.func @transform_3(%arg0: i32, %arg1: i32) -> (i32, i32) {
    %c0_i32 = arith.constant 0 : i32
    %c0_i32_0 = arith.constant 0 : i32
    return %arg1, %c0_i32 : i32, i32
  }
  func.func @transform_4(%arg0: i32, %arg1: i32) -> (i32, i32) {
    %c0_i32 = arith.constant 0 : i32
    %c0_i32_0 = arith.constant 0 : i32
    return %arg1, %c0_i32 : i32, i32
  }
  func.func @transform_6(%arg0: i32, %arg1: i32) -> (i32, i32, i32) {
    %c0_i32 = arith.constant 0 : i32
    %c0_i32_0 = arith.constant 0 : i32
    return %arg0, %arg1, %c0_i32 : i32, i32, i32
  }
}

</mosaic_0001>

<llo_original>
// kernel: tpu_custom_call.1
$region0: #{tpu_custom_call.1}
  #allocation0 [shape = 'u32[]', space=smem, size = 0x4, offset = 0x4, fixed_abs, tag = 'smem constant byte address 0x4 - core index']
  #allocation1 [shape = 'u32[72,128]{1,0:T(1,128)}', space=vmem, size = 0x9000, scoped, tag = 'internal scratch']
  #allocation2 [shape = 'bf16[2,16,128]{2,1,0:T(8,128)(2,1)}', space=vmem, size = 0x2000, scoped, tag = 'scratch operand']
  #allocation3 [shape = 's32[1]{0}', space=sflag, size = 0x4, scoped, tag = 'scratch operand']
  #allocation6 [shape = 's32[]', space=sflag, size = 0x4, offset = 0, fixed_abs, tag = 'sflag constant byte address 0x0 - dummy sync flag']
  %s0 = inlined_call_operand.vmem [shape: f32[2,16,12], index: 0, kind: input, shape index: {}]
  %s1 = inlined_call_operand.vmem [shape: f32[2,16,12], index: 1, kind: input, shape index: {}]
  %s2 = inlined_call_operand.vmem [shape: f32[16,2], index: 2, kind: input, shape index: {}]
  %s3 = inlined_call_operand.vmem [shape: f32[16,2], index: 3, kind: input, shape index: {}]
  %s4 = inlined_call_operand.vmem [shape: f32[16,2], index: 4, kind: input, shape index: {}]
  %s5 = inlined_call_operand.vmem [shape: bf16[16,128], index: 5, kind: input, shape index: {}]
  %s6 = inlined_call_operand.hbm [shape: f32[2,16,128], index: 6, kind: output, shape index: {}]
  %s7 = sld [smem:[#allocation0]]
  $region91: #{tpu_custom_call.1} parent=0
    _
  %s9 = ssub.s32 1, %s7
  %s10 = scalar_select 0, %s9, %s7
  $region1: #{tpu_custom_call.1} parent=0
    #allocation4 [shape = 'u8[16384]{0}', space=vmem, size = 0x4000, scoped, tag = 'output window, operand 0']
    #allocation5 [shape = 's32[2]{0}', space=sflag, size = 0x8, scoped, tag = 'scoped memory for tpu_custom_call.1']
    %11 = vsyncpa [#allocation5], 0
    %s12 = scalar_lea.sflag [#allocation5], 1
    %13 = vsyncpa %s12, 0
    loop: start=0, step=1, limit=4
    $region2: #{tpu_custom_call.1} parent=1 // loop_pre_header
      _
    $region3: #{tpu_custom_call.1} parent=1 // loop_header
      %s15 = sphi 0, %s19
      %p16 = scmp.ge.s32.totalorder %s15, 4
      %s22 = sphi 0, %s34
      %s23 = sphi 0, %s30
      %s24 = sphi 0, %s22
      %s25 = sphi 0, %s23
      %s26 = sphi 0, %s24
      %s27 = sphi 0, %s25
      %s39 = sphi 0, %s41
      %s42 = sphi 0, %s39
      %s43 = sphi 0, %s42
      %s59 = sphi 0, %s43
      %s67 = sphi 0, %s69
      %s70 = sphi 0, %s67
      %s71 = sphi 0, %s70
      %s87 = sphi 0, %s71
      %s93 = sphi 0, %s95
      %s96 = sphi 0, %s93
      %s97 = sphi 0, %s96
      %s113 = sphi 0, %s97
      %s119 = sphi 0, %s121
      %s122 = sphi 0, %s119
      %s123 = sphi 0, %s122
      %s139 = sphi 0, %s123
      %s145 = sphi 0, %s147
      %s148 = sphi 0, %s145
      %s149 = sphi 0, %s148
      %s165 = sphi 0, %s149
      %s173 = sphi 0, %s175
      %s176 = sphi 0, %s173
      %s177 = sphi 0, %s176
      %s193 = sphi 0, %s177
    $region4: #{tpu_custom_call.1} parent=1 // loop_header_branch
      %18 = sbr.rel (%p16) target = $region8
    $region5: #{tpu_custom_call.1} parent=1 // loop_body
      %s20 = ssub.s32 %s15, 1
      %s21 = ssub.s32 %s15, 2
      %s28 = sadd.s32 1, %s23
      %p29 = scmp.ge.s32.totalorder %s28, 1
      %s30 = scalar_select %p29, 0, %s28
      %s31 = sadd.s32 1, %s22
      %s32 = scalar_select %p29, %s31, %s22
      %p33 = scmp.ge.s32.totalorder %s32, 2
      %s34 = scalar_select %p33, 0, %s32
      %s35 = ssub.s32 %s22, %s34
      %s36 = ssub.s32 %s23, %s30
      %s37 = sor.u32 %s35, %s36
      %p38 = scmp.eq.s32.totalorder %s37, 0
      %s40 = sadd.s32 %s39, 1
      %s41 = scalar_select %p38, %s39, %s40
      %p44 = pneg %p38
      %p45 = scmp.eq.s32.totalorder %s15, 1
      %p46 = por %p44, %p45
      %p47 = scmp.ne.s32.totalorder %s39, %s42
      %p48 = scmp.eq.s32.totalorder %s15, 0
      %p49 = por %p47, %p48
      %p50 = scmp.ne.s32.totalorder %s39, %s42
      %p51 = scmp.eq.s32.totalorder %s20, 1
      %p52 = por %p50, %p51
      %p53 = scmp.ne.s32.totalorder %s42, %s43
      %p54 = scmp.eq.s32.totalorder %s20, 0
      %p55 = por %p53, %p54
      %p56 = scmp.ne.s32.totalorder %s42, %s43
      %p57 = scmp.eq.s32.totalorder %s21, 1
      %p58 = por %p56, %p57
      %p60 = scmp.ne.s32.totalorder %s43, %s59
      %p61 = scmp.eq.s32.totalorder %s21, 0
      %p62 = por %p60, %p61
      %s63 = ssub.s32 %s22, %s34
      %s64 = ssub.s32 %s23, %s30
      %s65 = sor.u32 %s63, %s64
      %p66 = scmp.eq.s32.totalorder %s65, 0
      %s68 = sadd.s32 %s67, 1
      %s69 = scalar_select %p66, %s67, %s68
      %p72 = pneg %p66
      %p73 = scmp.eq.s32.totalorder %s15, 1
      %p74 = por %p72, %p73
      %p75 = scmp.ne.s32.totalorder %s67, %s70
      %p76 = scmp.eq.s32.totalorder %s15, 0
      %p77 = por %p75, %p76
      %p78 = scmp.ne.s32.totalorder %s67, %s70
      %p79 = scmp.eq.s32.totalorder %s20, 1
      %p80 = por %p78, %p79
      %p81 = scmp.ne.s32.totalorder %s70, %s71
      %p82 = scmp.eq.s32.totalorder %s20, 0
      %p83 = por %p81, %p82
      %p84 = scmp.ne.s32.totalorder %s70, %s71
      %p85 = scmp.eq.s32.totalorder %s21, 1
      %p86 = por %p84, %p85
      %p88 = scmp.ne.s32.totalorder %s71, %s87
      %p89 = scmp.eq.s32.totalorder %s21, 0
      %p90 = por %p88, %p89
      %s91 = ssub.s32 %s23, %s30
      %p92 = scmp.eq.s32.totalorder %s91, 0
      %s94 = sadd.s32 %s93, 1
      %s95 = scalar_select %p92, %s93, %s94
      %p98 = pneg %p92
      %p99 = scmp.eq.s32.totalorder %s15, 1
      %p100 = por %p98, %p99
      %p101 = scmp.ne.s32.totalorder %s93, %s96
      %p102 = scmp.eq.s32.totalorder %s15, 0
      %p103 = por %p101, %p102
      %p104 = scmp.ne.s32.totalorder %s93, %s96
      %p105 = scmp.eq.s32.totalorder %s20, 1
      %p106 = por %p104, %p105
      %p107 = scmp.ne.s32.totalorder %s96, %s97
      %p108 = scmp.eq.s32.totalorder %s20, 0
      %p109 = por %p107, %p108
      %p110 = scmp.ne.s32.totalorder %s96, %s97
      %p111 = scmp.eq.s32.totalorder %s21, 1
      %p112 = por %p110, %p111
      %p114 = scmp.ne.s32.totalorder %s97, %s113
      %p115 = scmp.eq.s32.totalorder %s21, 0
      %p116 = por %p114, %p115
      %s117 = ssub.s32 %s23, %s30
      %p118 = scmp.eq.s32.totalorder %s117, 0
      %s120 = sadd.s32 %s119, 1
      %s121 = scalar_select %p118, %s119, %s120
      %p124 = pneg %p118
      %p125 = scmp.eq.s32.totalorder %s15, 1
      %p126 = por %p124, %p125
      %p127 = scmp.ne.s32.totalorder %s119, %s122
      %p128 = scmp.eq.s32.totalorder %s15, 0
      %p129 = por %p127, %p128
      %p130 = scmp.ne.s32.totalorder %s119, %s122
      %p131 = scmp.eq.s32.totalorder %s20, 1
      %p132 = por %p130, %p131
      %p133 = scmp.ne.s32.totalorder %s122, %s123
      %p134 = scmp.eq.s32.totalorder %s20, 0
      %p135 = por %p133, %p134
      %p136 = scmp.ne.s32.totalorder %s122, %s123
      %p137 = scmp.eq.s32.totalorder %s21, 1
      %p138 = por %p136, %p137
      %p140 = scmp.ne.s32.totalorder %s123, %s139
      %p141 = scmp.eq.s32.totalorder %s21, 0
      %p142 = por %p140, %p141
      %s143 = ssub.s32 %s23, %s30
      %p144 = scmp.eq.s32.totalorder %s143, 0
      %s146 = sadd.s32 %s145, 1
      %s147 = scalar_select %p144, %s145, %s146
      %p150 = pneg %p144
      %p151 = scmp.eq.s32.totalorder %s15, 1
      %p152 = por %p150, %p151
      %p153 = scmp.ne.s32.totalorder %s145, %s148
      %p154 = scmp.eq.s32.totalorder %s15, 0
      %p155 = por %p153, %p154
      %p156 = scmp.ne.s32.totalorder %s145, %s148
      %p157 = scmp.eq.s32.totalorder %s20, 1
      %p158 = por %p156, %p157
      %p159 = scmp.ne.s32.totalorder %s148, %s149
      %p160 = scmp.eq.s32.totalorder %s20, 0
      %p161 = por %p159, %p160
      %p162 = scmp.ne.s32.totalorder %s148, %s149
      %p163 = scmp.eq.s32.totalorder %s21, 1
      %p164 = por %p162, %p163
      %p166 = scmp.ne.s32.totalorder %s149, %s165
      %p167 = scmp.eq.s32.totalorder %s21, 0
      %p168 = por %p166, %p167
      %s169 = ssub.s32 %s22, %s34
      %s170 = ssub.s32 %s23, %s30
      %s171 = sor.u32 %s169, %s170
      %p172 = scmp.eq.s32.totalorder %s171, 0
      %s174 = sadd.s32 %s173, 1
      %s175 = scalar_select %p172, %s173, %s174
      %p178 = pneg %p172
      %p179 = scmp.eq.s32.totalorder %s15, 1
      %p180 = por %p178, %p179
      %p181 = scmp.ne.s32.totalorder %s173, %s176
      %p182 = scmp.eq.s32.totalorder %s15, 0
      %p183 = por %p181, %p182
      %p184 = scmp.ne.s32.totalorder %s173, %s176
      %p185 = scmp.eq.s32.totalorder %s20, 1
      %p186 = por %p184, %p185
      %p187 = scmp.ne.s32.totalorder %s176, %s177
      %p188 = scmp.eq.s32.totalorder %s20, 0
      %p189 = por %p187, %p188
      %p190 = scmp.ne.s32.totalorder %s176, %s177
      %p191 = scmp.eq.s32.totalorder %s21, 1
      %p192 = por %p190, %p191
      %p194 = scmp.ne.s32.totalorder %s177, %s193
      %p195 = scmp.eq.s32.totalorder %s21, 0
      %p196 = por %p194, %p195
      %p197 = scmp.le.s32.totalorder 1, %s15
      %p198 = scmp.lt.s32.totalorder %s15, 3
      %p199 = pnand %p197, %p198
      %p200 = pneg %p199
      // Predicated region
      $region9: #{tpu_custom_call.1} parent=5 // pred_check
        _
      $region10: #{tpu_custom_call.1} parent=5 // pred_check_branch
        %202 = sbr.rel (%p199) target = $region12
      $region11: #{tpu_custom_call.1} parent=5 // pred_region
        %s203 = ssub.s32 %s15, 1
        // Predicated region
        $region13: #{tpu_custom_call.1} parent=11 // pred_check
          %p204 = pneg %p109
        $region14: #{tpu_custom_call.1} parent=11 // pred_check_branch
          %206 = sbr.rel (%p204) target = $region16
        $region15: #{tpu_custom_call.1} parent=11 // pred_region
          %s207 = smul.u32 2, %s25
          %p208 = scmp.lt.s32.totalorder %s207, 1
          %s209 = scalar_select %p208, %s207, 1
          %s210 = smul.addr %s209, 8
          %s211 = scalar_lea.vmem %s2, %s210
          %s212 = smul.u32 2, %s25
        $region16: #{tpu_custom_call.1} parent=11 // pred_fallthru
          _
        // Predicated region
        $region17: #{tpu_custom_call.1} parent=11 // pred_check
          %p213 = pneg %p135
        $region18: #{tpu_custom_call.1} parent=11 // pred_check_branch
          %215 = sbr.rel (%p213) target = $region20
        $region19: #{tpu_custom_call.1} parent=11 // pred_region
          %s216 = smul.u32 2, %s25
          %p217 = scmp.lt.s32.totalorder %s216, 1
          %s218 = scalar_select %p217, %s216, 1
          %s219 = smul.addr %s218, 8
          %s220 = scalar_lea.vmem %s3, %s219
          %s221 = smul.u32 2, %s25
        $region20: #{tpu_custom_call.1} parent=11 // pred_fallthru
          _
        // Predicated region
        $region21: #{tpu_custom_call.1} parent=11 // pred_check
          %p222 = pneg %p161
        $region22: #{tpu_custom_call.1} parent=11 // pred_check_branch
          %224 = sbr.rel (%p222) target = $region24
        $region23: #{tpu_custom_call.1} parent=11 // pred_region
          %s225 = smul.u32 2, %s25
          %p226 = scmp.lt.s32.totalorder %s225, 1
          %s227 = scalar_select %p226, %s225, 1
          %s228 = smul.addr %s227, 8
          %s229 = scalar_lea.vmem %s4, %s228
          %s230 = smul.u32 2, %s25
        $region24: #{tpu_custom_call.1} parent=11 // pred_fallthru
          _
      $region12: #{tpu_custom_call.1} parent=5 // pred_fallthru
        _
      %p231 = scmp.lt.s32.totalorder %s15, 2
      // Predicated region
      $region25: #{tpu_custom_call.1} parent=5 // pred_check
        %p232 = pneg %p231
      $region26: #{tpu_custom_call.1} parent=5 // pred_check_branch
        %234 = sbr.rel (%p232) target = $region28
      $region27: #{tpu_custom_call.1} parent=5 // pred_region
        // Predicated region
        $region29: #{tpu_custom_call.1} parent=27 // pred_check
          %p235 = pneg %p49
        $region30: #{tpu_custom_call.1} parent=27 // pred_check_branch
          %237 = sbr.rel (%p235) target = $region32
        $region31: #{tpu_custom_call.1} parent=27 // pred_region
          %s238 = smul.u32 2, %s23
          %p239 = scmp.lt.s32.totalorder %s22, 1
          %s240 = scalar_select %p239, %s22, 1
          %p241 = scmp.lt.s32.totalorder %s238, 1
          %s242 = scalar_select %p241, %s238, 1
          %s243 = smul.addr %s240, 2
          %s244 = sadd.s32 %s242, %s243
          %s245 = smul.addr %s244, 8
          %s246 = scalar_lea.vmem %s0, %s245
          %s247 = smul.u32 2, %s23
        $region32: #{tpu_custom_call.1} parent=27 // pred_fallthru
          _
        // Predicated region
        $region33: #{tpu_custom_call.1} parent=27 // pred_check
          %p248 = pneg %p77
        $region34: #{tpu_custom_call.1} parent=27 // pred_check_branch
          %250 = sbr.rel (%p248) target = $region36
        $region35: #{tpu_custom_call.1} parent=27 // pred_region
          %s251 = smul.u32 2, %s23
          %p252 = scmp.lt.s32.totalorder %s22, 1
          %s253 = scalar_select %p252, %s22, 1
          %p254 = scmp.lt.s32.totalorder %s251, 1
          %s255 = scalar_select %p254, %s251, 1
          %s256 = smul.addr %s253, 2
          %s257 = sadd.s32 %s255, %s256
          %s258 = smul.addr %s257, 8
          %s259 = scalar_lea.vmem %s1, %s258
          %s260 = smul.u32 2, %s23
        $region36: #{tpu_custom_call.1} parent=27 // pred_fallthru
          _
      $region28: #{tpu_custom_call.1} parent=5 // pred_fallthru
        _
      %p261 = scmp.le.s32.totalorder 1, %s15
      %p262 = scmp.lt.s32.totalorder %s15, 3
      %p263 = pnand %p261, %p262
      %p264 = pneg %p263
      // Predicated region
      $region37: #{tpu_custom_call.1} parent=5 // pred_check
        _
      $region38: #{tpu_custom_call.1} parent=5 // pred_check_branch
        %266 = sbr.rel (%p263) target = $region40
      $region39: #{tpu_custom_call.1} parent=5 // pred_region
        %s267 = ssub.s32 %s15, 1
        %s268 = smul.u32 2, %s25
        %p269 = scmp.lt.s32.totalorder %s24, 1
        %s270 = scalar_select %p269, %s24, 1
        %p271 = scmp.lt.s32.totalorder %s268, 1
        %s272 = scalar_select %p271, %s268, 1
        %s273 = smul.addr %s270, 2
        %s274 = sadd.s32 %s272, %s273
        %s275 = smul.addr %s274, 8
        %s276 = scalar_lea.vmem %s0, %s275
        %p277 = pneg %p55
        %p278 = pneg %p52
        %s279 = smul.u32 2, %s25
        %p280 = scmp.lt.s32.totalorder %s24, 1
        %s281 = scalar_select %p280, %s24, 1
        %p282 = scmp.lt.s32.totalorder %s279, 1
        %s283 = scalar_select %p282, %s279, 1
        %s284 = smul.addr %s281, 2
        %s285 = sadd.s32 %s283, %s284
        %s286 = smul.addr %s285, 8
        %s287 = scalar_lea.vmem %s1, %s286
        %p288 = pneg %p83
        %p289 = pneg %p80
        %s290 = smul.u32 2, %s25
        %p291 = scmp.lt.s32.totalorder %s290, 1
        %s292 = scalar_select %p291, %s290, 1
        %s293 = smul.addr %s292, 8
        %s294 = scalar_lea.vmem %s2, %s293
        %p295 = pneg %p109
        %p296 = pneg %p106
        %s297 = smul.u32 2, %s25
        %p298 = scmp.lt.s32.totalorder %s297, 1
        %s299 = scalar_select %p298, %s297, 1
        %s300 = smul.addr %s299, 8
        %s301 = scalar_lea.vmem %s3, %s300
        %p302 = pneg %p135
        %p303 = pneg %p132
        %s304 = smul.u32 2, %s25
        %p305 = scmp.lt.s32.totalorder %s304, 1
        %s306 = scalar_select %p305, %s304, 1
        %s307 = smul.addr %s306, 8
        %s308 = scalar_lea.vmem %s4, %s307
        %p309 = pneg %p161
        %p310 = pneg %p158
        %p311 = pneg %p189
        %p312 = pneg %p186
        %s313 = sand.u32 %s176, 1
        %s314 = scalar_lea.sflag [#allocation5], %s313
        %s315 = sand.u32 %s176, 1
        %s316 = smul.addr %s315, 16
        %s317 = scalar_lea.vmem [#allocation4], %s316
        %s318 = smul.u32 2, %s25
        %p319 = scmp.lt.s32.totalorder %s24, 1
        %s320 = scalar_select %p319, %s24, 1
        %p321 = scmp.lt.s32.totalorder %s318, 1
        %s322 = scalar_select %p321, %s318, 1
        %s323 = smul.addr %s320, 2
        %s324 = sadd.s32 %s322, %s323
        %s325 = smul.addr %s324, 8
        %s326 = scalar_lea.vmem %s0, %s325
        %s327 = smul.u32 2, %s25
        %s328 = smul.u32 2, %s25
        %p329 = scmp.lt.s32.totalorder %s24, 1
        %s330 = scalar_select %p329, %s24, 1
        %p331 = scmp.lt.s32.totalorder %s328, 1
        %s332 = scalar_select %p331, %s328, 1
        %s333 = smul.addr %s330, 2
        %s334 = sadd.s32 %s332, %s333
        %s335 = smul.addr %s334, 8
        %s336 = scalar_lea.vmem %s1, %s335
        %s337 = smul.u32 2, %s25
        %s338 = smul.u32 2, %s25
        %p339 = scmp.lt.s32.totalorder %s338, 1
        %s340 = scalar_select %p339, %s338, 1
        %s341 = smul.addr %s340, 8
        %s342 = scalar_lea.vmem %s2, %s341
        %s343 = smul.u32 2, %s25
        %s344 = smul.u32 2, %s25
        %p345 = scmp.lt.s32.totalorder %s344, 1
        %s346 = scalar_select %p345, %s344, 1
        %s347 = smul.addr %s346, 8
        %s348 = scalar_lea.vmem %s3, %s347
        %s349 = smul.u32 2, %s25
        %s350 = smul.u32 2, %s25
        %p351 = scmp.lt.s32.totalorder %s350, 1
        %s352 = scalar_select %p351, %s350, 1
        %s353 = smul.addr %s352, 8
        %s354 = scalar_lea.vmem %s4, %s353
        %s355 = smul.u32 2, %s25
        %s356 = smul.u32 2, %s25
        %p358 = scmp.eq.s32.totalorder %s24, 0
        %p359 = scmp.eq.s32.totalorder %s25, 0
        %p360 = pnand %p358, %p359
        %p361 = pneg %p360
        // Predicated region
        $region41: #{tpu_custom_call.1} parent=39 // pred_check
          _
        $region42: #{tpu_custom_call.1} parent=39 // pred_check_branch
          %363 = sbr.rel (%p360) target = $region44
        $region43: #{tpu_custom_call.1} parent=39 // pred_region
          // Predicated region
          $region45: #{tpu_custom_call.1} parent=43 // pred_check
            _
          $region46: #{tpu_custom_call.1} parent=43 // pred_check_branch
            %365 = sbr.rel (0) target = $region48
          $region47: #{tpu_custom_call.1} parent=43 // pred_region
            // Predicated region
            $region60: #{tpu_custom_call.1} parent=47 // pred_check
              _
            $region61: #{tpu_custom_call.1} parent=47 // pred_check_branch
              %381 = sbr.rel (0) target = $region63
            $region62: #{tpu_custom_call.1} parent=47 // pred_region
              loop: start=0, step=1, limit=1
              $region64: #{tpu_custom_call.1} parent=62 // loop_pre_header
                _
              $region65: #{tpu_custom_call.1} parent=62 // loop_header
                %s383 = sphi 0, %s387
                %p384 = scmp.ge.s32.totalorder %s383, 1
                %s388 = sphi %s5, %s5
                %s389 = sphi [#allocation2], [#allocation2]
              $region66: #{tpu_custom_call.1} parent=62 // loop_header_branch
                %386 = sbr.rel (%p384) target = $region70
              $region67: #{tpu_custom_call.1} parent=62 // loop_body
                %v390 = vld [vmem:[%s388] sm:$0xff]
                %391 = vst [vmem:[%s389] sm:$0xff] %v390
              $region68: #{tpu_custom_call.1} parent=62 // loop_footer
                %s387 = sadd.s32 1, %s383
              $region69: #{tpu_custom_call.1} parent=62 // loop_footer_branch
                %382 = sbr.rel target = $region65
              $region70: #{tpu_custom_call.1} parent=62 // loop_exit
                _
            $region63: #{tpu_custom_call.1} parent=47 // pred_fallthru
              _
            // Predicated region
            $region71: #{tpu_custom_call.1} parent=47 // pred_check
              _
            $region72: #{tpu_custom_call.1} parent=47 // pred_check_branch
              %393 = sbr.rel target = $region74
            $region73: #{tpu_custom_call.1} parent=47 // pred_region
              _
            $region74: #{tpu_custom_call.1} parent=47 // pred_fallthru
              _
          $region48: #{tpu_custom_call.1} parent=43 // pred_fallthru
            _
          // Predicated region
          $region49: #{tpu_custom_call.1} parent=43 // pred_check
            _
          $region50: #{tpu_custom_call.1} parent=43 // pred_check_branch
            %367 = sbr.rel target = $region52
          $region51: #{tpu_custom_call.1} parent=43 // pred_region
            %s369 = ssub.s32 256, 1
            loop: start=0, step=1, limit=1
            $region53: #{tpu_custom_call.1} parent=51 // loop_pre_header
              _
            $region54: #{tpu_custom_call.1} parent=51 // loop_header
              %s371 = sphi 0, %s375
              %p372 = scmp.ge.s32.totalorder %s371, 1
              %s376 = sphi %s5, %s5
              %s377 = sphi [#allocation2], [#allocation2]
            $region55: #{tpu_custom_call.1} parent=51 // loop_header_branch
              %374 = sbr.rel (%p372) target = $region59
            $region56: #{tpu_custom_call.1} parent=51 // loop_body
              %v378 = vld [vmem:[%s376] sm:%s369]
              %379 = vst [vmem:[%s377] sm:%s369] %v378
            $region57: #{tpu_custom_call.1} parent=51 // loop_footer
              %s375 = sadd.s32 1, %s371
            $region58: #{tpu_custom_call.1} parent=51 // loop_footer_branch
              %370 = sbr.rel target = $region54
            $region59: #{tpu_custom_call.1} parent=51 // loop_exit
              _
          $region52: #{tpu_custom_call.1} parent=43 // pred_fallthru
            _
          // Predicated region
          $region75: #{tpu_custom_call.1} parent=43 // pred_check
            _
          $region76: #{tpu_custom_call.1} parent=43 // pred_check_branch
            %396 = sbr.rel (0) target = $region78
          $region77: #{tpu_custom_call.1} parent=43 // pred_region
            %397 = vsyncadd [#allocation3], 128
          $region78: #{tpu_custom_call.1} parent=43 // pred_fallthru
            _
          %s398 = smul.u32 4, 2
          %s399 = smul.u32 %s398, 1
          %s400 = sshll.u32 %s399, 4
          %401 = dma.done [#allocation3], %s400
        $region44: #{tpu_custom_call.1} parent=39 // pred_fallthru
          _
        %p402 = scmp.lt.s32.totalorder %s24, 0
        %s403 = ssub.s32 0, %s24
        %s404 = scalar_select %p402, %s403, %s24
        %s405 = sand.u32 %s404, 1
        %s406 = ssub.s32 0, %s405
        %s407 = scalar_select %p402, %s406, %s405
        %p408 = scmp.ne.s32.totalorder %s407, 0
        %p409 = scmp.lt.s32.totalorder %s407, 0
        %p410 = pnand %p409, %p408
        %p411 = pneg %p410
        %s412 = sadd.s32 %s407, 2
        %s413 = scalar_select %p411, %s412, %s407
        %s414 = sadd.s32 %s24, 1
        %p415 = scmp.lt.s32.totalorder %s414, 0
        %s416 = ssub.s32 0, %s414
        %s417 = scalar_select %p415, %s416, %s414
        %s418 = sand.u32 %s417, 1
        %s419 = ssub.s32 0, %s418
        %s420 = scalar_select %p415, %s419, %s418
        %p421 = scmp.ne.s32.totalorder %s420, 0
        %p422 = scmp.lt.s32.totalorder %s420, 0
        %p423 = pnand %p422, %p421
        %p424 = pneg %p423
        %s425 = sadd.s32 %s420, 2
        %s426 = scalar_select %p424, %s425, %s420
        %v427 = vld [vmem:[%s326] sm:$0xff]
        %v428 = vld [vmem:[%s326 + $0x8] sm:$0xff]
        %v429 = vld [vmem:[%s336] sm:$0xff]
        %v430 = vld [vmem:[%s336 + $0x8] sm:$0xff]
        %v431 = vld [vmem:[%s342] sm:$0xff]
        %v432 = vld [vmem:[%s342 + $0x8] sm:$0xff]
        %v433 = vld [vmem:[%s348] sm:$0xff]
        %v434 = vld [vmem:[%s348 + $0x8] sm:$0xff]
        %v435 = vld [vmem:[%s354] sm:$0xff]
        %v436 = vld [vmem:[%s354 + $0x8] sm:$0xff]
        %438 = vset.pattern.permute.xlu0 0
        %439 = vperm.xlu0 %438, %v431
        %v440 = vpop.permute.xlu0 %439
        %443 = vset.pattern.permute.xlu0 0
        %444 = vperm.xlu0 %443, %v432
        %v445 = vpop.permute.xlu0 %444
        %v447 = vsub.f32 %v427, %v440
        %v448 = vsub.f32 %v428, %v445
        %v449 = vadd.f32 %v433, 1e-06
        %v450 = vadd.f32 %v434, 1e-06
        %v451 = vrcp.pop %v449
        %v452 = vmul.f32 %v449, %v451
        %v453 = vsub.f32 1.0, %v452
        %v454 = vmul.f32 %v451, %v453
        %v455 = vadd.f32 %v451, %v454
        %vm456 = vweird.f32 %v449
        %vm457 = vweird.f32 %v451
        %vm458 = vmor %vm456, %vm457
        %v459 = vsel %vm458, %v451, %v455
        %v460 = vand.u32 2147483647, %v449
        %vm461 = vcmp.eq.f32.partialorder %v460, 8.507059e+37
        %v462 = vand.u32 %v449, 2147483648
        %v463 = vor.u32 1.1754944e-38, %v462
        %v464 = vsel %vm461, %v463, %v459
        %v465 = vmul.f32 -0.5, %v464
        %v466 = vrcp.pop %v450
        %v467 = vmul.f32 %v450, %v466
        %v468 = vsub.f32 1.0, %v467
        %v469 = vmul.f32 %v466, %v468
        %v470 = vadd.f32 %v466, %v469
        %vm471 = vweird.f32 %v450
        %vm472 = vweird.f32 %v466
        %vm473 = vmor %vm471, %vm472
        %v474 = vsel %vm473, %v466, %v470
        %v475 = vand.u32 2147483647, %v450
        %vm476 = vcmp.eq.f32.partialorder %v475, 8.507059e+37
        %v477 = vand.u32 %v450, 2147483648
        %v478 = vor.u32 1.1754944e-38, %v477
        %v479 = vsel %vm476, %v478, %v474
        %v480 = vmul.f32 -0.5, %v479
        %v481 = vmul.f32 %v447, %v447
        %v482 = vmul.f32 %v448, %v448
        %484 = vset.pattern.permute.xlu0 0
        %485 = vperm.xlu0 %484, %v465
        %v486 = vpop.permute.xlu0 %485
        %489 = vset.pattern.permute.xlu0 0
        %490 = vperm.xlu0 %489, %v480
        %v491 = vpop.permute.xlu0 %490
        %v493 = vmul.f32 %v481, %v486
        %v494 = vmul.f32 %v482, %v491
        %v495 = vmul.f32 %v493, 1.442695
        %v496 = vpow.pop %v495
        %v497 = vmul.f32 %v494, 1.442695
        %v498 = vpow.pop %v497
        %v499 = vmul.f32 %v496, %v429
        %v500 = vmul.f32 %v498, %v430
        %vm501 = vcmask 97280
        %v502 = vsel %vm501, %v499, 0.0
        %503 = vadd.xlane.f32.xlu0 %v502
        %v504 = vpop.xlane.xlu0 %503
        %v505 = vsel %vm501, %v500, 0.0
        %506 = vadd.xlane.f32.xlu0 %v505
        %v507 = vpop.xlane.xlu0 %506
        %v508 = vadd.f32 %v504, 1e-06
        %v509 = vadd.f32 %v507, 1e-06
        %v510 = vrcp.pop %v508
        %v511 = vrcp.pop %v509
        %v512 = vmul.f32 %v435, %v510
        %v513 = vmul.f32 %v436, %v511
        %515 = vset.pattern.permute.xlu0 0
        %516 = vperm.xlu0 %515, %v512
        %v517 = vpop.permute.xlu0 %516
        %520 = vset.pattern.permute.xlu0 0
        %521 = vperm.xlu0 %520, %v513
        %v522 = vpop.permute.xlu0 %521
        %v524 = vmul.f32 %v499, %v517
        %v525 = vmul.f32 %v500, %v522
        %526 = vset.pattern.permute.xlu0 1
        %527 = vperm.xlu0 %526, %v431
        %v528 = vpop.permute.xlu0 %527
        %530 = vset.pattern.permute.xlu0 1
        %531 = vperm.xlu0 %530, %v432
        %v532 = vpop.permute.xlu0 %531
        %v534 = vsub.f32 %v427, %v528
        %v535 = vsub.f32 %v428, %v532
        %v536 = vmul.f32 %v534, %v534
        %v537 = vmul.f32 %v535, %v535
        %538 = vset.pattern.permute.xlu0 1
        %539 = vperm.xlu0 %538, %v465
        %v540 = vpop.permute.xlu0 %539
        %542 = vset.pattern.permute.xlu0 1
        %543 = vperm.xlu0 %542, %v480
        %v544 = vpop.permute.xlu0 %543
        %v546 = vmul.f32 %v536, %v540
        %v547 = vmul.f32 %v537, %v544
        %v548 = vmul.f32 %v546, 1.442695
        %v549 = vpow.pop %v548
        %v550 = vmul.f32 %v547, 1.442695
        %v551 = vpow.pop %v550
        %v552 = vmul.f32 %v549, %v429
        %v553 = vmul.f32 %v551, %v430
        %v554 = vsel %vm501, %v552, 0.0
        %555 = vadd.xlane.f32.xlu0 %v554
        %v556 = vpop.xlane.xlu0 %555
        %v557 = vsel %vm501, %v553, 0.0
        %558 = vadd.xlane.f32.xlu0 %v557
        %v559 = vpop.xlane.xlu0 %558
        %v560 = vadd.f32 %v556, 1e-06
        %v561 = vadd.f32 %v559, 1e-06
        %v562 = vrcp.pop %v560
        %v563 = vrcp.pop %v561
        %v564 = vmul.f32 %v435, %v562
        %v565 = vmul.f32 %v436, %v563
        %567 = vset.pattern.permute.xlu0 1
        %568 = vperm.xlu0 %567, %v564
        %v569 = vpop.permute.xlu0 %568
        %572 = vset.pattern.permute.xlu0 1
        %573 = vperm.xlu0 %572, %v565
        %v574 = vpop.permute.xlu0 %573
        %v576 = vmul.f32 %v552, %v569
        %v577 = vmul.f32 %v553, %v574
        %v578 = vadd.f32 %v524, %v576
        %v579 = vadd.f32 %v525, %v577
        %v580 = vcvt.f32.s32.to.zero.pseudo %v427
        %v581 = vcvt.f32.s32.to.zero.pseudo %v428
        %s582 = smul.u32 %s25, 16
        %v583 = vlaneseq
        %v584 = vshrl.u32 %v583, 7
        %v585 = vadd.s32 %v584, 8
        %v586 = vstv %s582
        %v587 = vadd.s32 %v586, %v584
        %v588 = vadd.s32 %v586, %v585
        %vm589 = vcmp.eq.s32.totalorder %v580, %v587
        %vm590 = vcmp.eq.s32.totalorder %v581, %v588
        %v591 = vsel %vm589, 0.0, %v578
        %v592 = vsel %vm590, 0.0, %v579
        %v593 = vlaneseq
        %v594 = vand.u32 %v593, 127
        %595 = vset.pattern.permute.xlu0 0
        %596 = vperm.xlu0 %595, %v580
        %v597 = vpop.permute.xlu0 %596
        %598 = vset.pattern.permute.xlu0 0
        %599 = vperm.xlu0 %598, %v581
        %v600 = vpop.permute.xlu0 %599
        %vm601 = vcmp.eq.s32.totalorder %v594, %v597
        %vm602 = vcmp.eq.s32.totalorder %v594, %v600
        %604 = vset.pattern.permute.xlu0 0
        %605 = vperm.xlu0 %604, %v591
        %v606 = vpop.permute.xlu0 %605
        %609 = vset.pattern.permute.xlu0 0
        %610 = vperm.xlu0 %609, %v592
        %v611 = vpop.permute.xlu0 %610
        %v613 = vsel %vm601, %v606, 0.0
        %v614 = vsel %vm602, %v611, 0.0
        %615 = vset.pattern.permute.xlu0 1
        %616 = vperm.xlu0 %615, %v580
        %v617 = vpop.permute.xlu0 %616
        %618 = vset.pattern.permute.xlu0 1
        %619 = vperm.xlu0 %618, %v581
        %v620 = vpop.permute.xlu0 %619
        %vm621 = vcmp.eq.s32.totalorder %v594, %v617
        %vm622 = vcmp.eq.s32.totalorder %v594, %v620
        %623 = vset.pattern.permute.xlu0 1
        %624 = vperm.xlu0 %623, %v591
        %v625 = vpop.permute.xlu0 %624
        %627 = vset.pattern.permute.xlu0 1
        %628 = vperm.xlu0 %627, %v592
        %v629 = vpop.permute.xlu0 %628
        %v631 = vsel %vm621, %v625, 0.0
        %v632 = vsel %vm622, %v629, 0.0
        %v633 = vadd.f32 %v613, %v631
        %v634 = vadd.f32 %v614, %v632
        %635 = vset.pattern.permute.xlu0 2
        %636 = vperm.xlu0 %635, %v580
        %v637 = vpop.permute.xlu0 %636
        %638 = vset.pattern.permute.xlu0 2
        %639 = vperm.xlu0 %638, %v581
        %v640 = vpop.permute.xlu0 %639
        %vm641 = vcmp.eq.s32.totalorder %v594, %v637
        %vm642 = vcmp.eq.s32.totalorder %v594, %v640
        %643 = vset.pattern.permute.xlu0 2
        %644 = vperm.xlu0 %643, %v591
        %v645 = vpop.permute.xlu0 %644
        %647 = vset.pattern.permute.xlu0 2
        %648 = vperm.xlu0 %647, %v592
        %v649 = vpop.permute.xlu0 %648
        %v651 = vsel %vm641, %v645, 0.0
        %v652 = vsel %vm642, %v649, 0.0
        %v653 = vadd.f32 %v633, %v651
        %v654 = vadd.f32 %v634, %v652
        %655 = vset.pattern.permute.xlu0 3
        %656 = vperm.xlu0 %655, %v580
        %v657 = vpop.permute.xlu0 %656
        %658 = vset.pattern.permute.xlu0 3
        %659 = vperm.xlu0 %658, %v581
        %v660 = vpop.permute.xlu0 %659
        %vm661 = vcmp.eq.s32.totalorder %v594, %v657
        %vm662 = vcmp.eq.s32.totalorder %v594, %v660
        %663 = vset.pattern.permute.xlu0 3
        %664 = vperm.xlu0 %663, %v591
        %v665 = vpop.permute.xlu0 %664
        %667 = vset.pattern.permute.xlu0 3
        %668 = vperm.xlu0 %667, %v592
        %v669 = vpop.permute.xlu0 %668
        %v671 = vsel %vm661, %v665, 0.0
        %v672 = vsel %vm662, %v669, 0.0
        %v673 = vadd.f32 %v653, %v671
        %v674 = vadd.f32 %v654, %v672
        %675 = vset.pattern.permute.xlu0 4
        %676 = vperm.xlu0 %675, %v580
        %v677 = vpop.permute.xlu0 %676
        %678 = vset.pattern.permute.xlu0 4
        %679 = vperm.xlu0 %678, %v581
        %v680 = vpop.permute.xlu0 %679
        %vm681 = vcmp.eq.s32.totalorder %v594, %v677
        %vm682 = vcmp.eq.s32.totalorder %v594, %v680
        %683 = vset.pattern.permute.xlu0 4
        %684 = vperm.xlu0 %683, %v591
        %v685 = vpop.permute.xlu0 %684
        %687 = vset.pattern.permute.xlu0 4
        %688 = vperm.xlu0 %687, %v592
        %v689 = vpop.permute.xlu0 %688
        %v691 = vsel %vm681, %v685, 0.0
        %v692 = vsel %vm682, %v689, 0.0
        %v693 = vadd.f32 %v673, %v691
        %v694 = vadd.f32 %v674, %v692
        %695 = vset.pattern.permute.xlu0 5
        %696 = vperm.xlu0 %695, %v580
        %v697 = vpop.permute.xlu0 %696
        %698 = vset.pattern.permute.xlu0 5
        %699 = vperm.xlu0 %698, %v581
        %v700 = vpop.permute.xlu0 %699
        %vm701 = vcmp.eq.s32.totalorder %v594, %v697
        %vm702 = vcmp.eq.s32.totalorder %v594, %v700
        %703 = vset.pattern.permute.xlu0 5
        %704 = vperm.xlu0 %703, %v591
        %v705 = vpop.permute.xlu0 %704
        %707 = vset.pattern.permute.xlu0 5
        %708 = vperm.xlu0 %707, %v592
        %v709 = vpop.permute.xlu0 %708
        %v711 = vsel %vm701, %v705, 0.0
        %v712 = vsel %vm702, %v709, 0.0
        %v713 = vadd.f32 %v693, %v711
        %v714 = vadd.f32 %v694, %v712
        %715 = vset.pattern.permute.xlu0 6
        %716 = vperm.xlu0 %715, %v580
        %v717 = vpop.permute.xlu0 %716
        %718 = vset.pattern.permute.xlu0 6
        %719 = vperm.xlu0 %718, %v581
        %v720 = vpop.permute.xlu0 %719
        %vm721 = vcmp.eq.s32.totalorder %v594, %v717
        %vm722 = vcmp.eq.s32.totalorder %v594, %v720
        %723 = vset.pattern.permute.xlu0 6
        %724 = vperm.xlu0 %723, %v591
        %v725 = vpop.permute.xlu0 %724
        %727 = vset.pattern.permute.xlu0 6
        %728 = vperm.xlu0 %727, %v592
        %v729 = vpop.permute.xlu0 %728
        %v731 = vsel %vm721, %v725, 0.0
        %v732 = vsel %vm722, %v729, 0.0
        %v733 = vadd.f32 %v713, %v731
        %v734 = vadd.f32 %v714, %v732
        %735 = vset.pattern.permute.xlu0 7
        %736 = vperm.xlu0 %735, %v580
        %v737 = vpop.permute.xlu0 %736
        %738 = vset.pattern.permute.xlu0 7
        %739 = vperm.xlu0 %738, %v581
        %v740 = vpop.permute.xlu0 %739
        %vm741 = vcmp.eq.s32.totalorder %v594, %v737
        %vm742 = vcmp.eq.s32.totalorder %v594, %v740
        %743 = vset.pattern.permute.xlu0 7
        %744 = vperm.xlu0 %743, %v591
        %v745 = vpop.permute.xlu0 %744
        %747 = vset.pattern.permute.xlu0 7
        %748 = vperm.xlu0 %747, %v592
        %v749 = vpop.permute.xlu0 %748
        %v751 = vsel %vm741, %v745, 0.0
        %v752 = vsel %vm742, %v749, 0.0
        %v753 = vadd.f32 %v733, %v751
        %v754 = vadd.f32 %v734, %v752
        %755 = vset.pattern.permute.xlu0 8
        %756 = vperm.xlu0 %755, %v580
        %v757 = vpop.permute.xlu0 %756
        %758 = vset.pattern.permute.xlu0 8
        %759 = vperm.xlu0 %758, %v581
        %v760 = vpop.permute.xlu0 %759
        %vm761 = vcmp.eq.s32.totalorder %v594, %v757
        %vm762 = vcmp.eq.s32.totalorder %v594, %v760
        %763 = vset.pattern.permute.xlu0 8
        %764 = vperm.xlu0 %763, %v591
        %v765 = vpop.permute.xlu0 %764
        %767 = vset.pattern.permute.xlu0 8
        %768 = vperm.xlu0 %767, %v592
        %v769 = vpop.permute.xlu0 %768
        %v771 = vsel %vm761, %v765, 0.0
        %v772 = vsel %vm762, %v769, 0.0
        %v773 = vadd.f32 %v753, %v771
        %v774 = vadd.f32 %v754, %v772
        %775 = vset.pattern.permute.xlu0 9
        %776 = vperm.xlu0 %775, %v580
        %v777 = vpop.permute.xlu0 %776
        %778 = vset.pattern.permute.xlu0 9
        %779 = vperm.xlu0 %778, %v581
        %v780 = vpop.permute.xlu0 %779
        %vm781 = vcmp.eq.s32.totalorder %v594, %v777
        %vm782 = vcmp.eq.s32.totalorder %v594, %v780
        %783 = vset.pattern.permute.xlu0 9
        %784 = vperm.xlu0 %783, %v591
        %v785 = vpop.permute.xlu0 %784
        %787 = vset.pattern.permute.xlu0 9
        %788 = vperm.xlu0 %787, %v592
        %v789 = vpop.permute.xlu0 %788
        %v791 = vsel %vm781, %v785, 0.0
        %v792 = vsel %vm782, %v789, 0.0
        %v793 = vadd.f32 %v773, %v791
        %v794 = vadd.f32 %v774, %v792
        %795 = vset.pattern.permute.xlu0 10
        %796 = vperm.xlu0 %795, %v580
        %v797 = vpop.permute.xlu0 %796
        %798 = vset.pattern.permute.xlu0 10
        %799 = vperm.xlu0 %798, %v581
        %v800 = vpop.permute.xlu0 %799
        %vm801 = vcmp.eq.s32.totalorder %v594, %v797
        %vm802 = vcmp.eq.s32.totalorder %v594, %v800
        %803 = vset.pattern.permute.xlu0 10
        %804 = vperm.xlu0 %803, %v591
        %v805 = vpop.permute.xlu0 %804
        %807 = vset.pattern.permute.xlu0 10
        %808 = vperm.xlu0 %807, %v592
        %v809 = vpop.permute.xlu0 %808
        %v811 = vsel %vm801, %v805, 0.0
        %v812 = vsel %vm802, %v809, 0.0
        %v813 = vadd.f32 %v793, %v811
        %v814 = vadd.f32 %v794, %v812
        %815 = vset.pattern.permute.xlu0 11
        %816 = vperm.xlu0 %815, %v580
        %v817 = vpop.permute.xlu0 %816
        %818 = vset.pattern.permute.xlu0 11
        %819 = vperm.xlu0 %818, %v581
        %v820 = vpop.permute.xlu0 %819
        %vm821 = vcmp.eq.s32.totalorder %v594, %v817
        %vm822 = vcmp.eq.s32.totalorder %v594, %v820
        %823 = vset.pattern.permute.xlu0 11
        %824 = vperm.xlu0 %823, %v591
        %v825 = vpop.permute.xlu0 %824
        %827 = vset.pattern.permute.xlu0 11
        %828 = vperm.xlu0 %827, %v592
        %v829 = vpop.permute.xlu0 %828
        %v831 = vsel %vm821, %v825, 0.0
        %v832 = vsel %vm822, %v829, 0.0
        %v833 = vadd.f32 %v813, %v831
        %v834 = vadd.f32 %v814, %v832
        %v835 = vpack.c.bf16 %v834, %v833
        %s836 = smul.u32 %s413, 2
        %s837 = smul.addr %s836, 4
        %s838 = scalar_lea.vmem [#allocation2], %s837
        %v839 = vld [vmem:[%s838] sm:$0xf]
        %v840 = vld [vmem:[%s838 + $0x4] sm:$0xf]
        %v843 = vunpack.c.l.b16 %v839
        %v844 = vunpack.c.l.b16 %v840
        %v845 = vpack.c.b16 %v844, %v843
        %vm847 = vcmask 130048
        %v849 = vsel %vm847, %v835, 0
        %851 = vmatpush.bf16.msra.mxu0 0
        %852 = vmatpush.bf16.msra.mxu0 0
        %853 = vmatpush.bf16.msra.mxu0 0
        %854 = vmatpush.bf16.msra.mxu0 0
        %855 = vmatpush.bf16.msra.mxu0 0
        %856 = vmatpush.bf16.msra.mxu0 0
        %857 = vmatpush.bf16.msra.mxu0 0
        %858 = vmatpush.bf16.msra.mxu0 %v845
        %859 = vmatmul.bf16.gmra.mxu0 %v849
        %v860 = vpop.f32.mrf.mxu0
        %v861 = vadd.f32 0.0, %v860
        %v862 = vpop.f32.mrf.mxu0
        %v863 = vadd.f32 0.0, %v862
        %864 = vdwg.mxu0
        %865 = vst [vmem:[%s317] sm:$0xff] %v861
        %866 = vst [vmem:[%s317 + $0x8] sm:$0xff] %v863
        %v867 = vpack.c.bf16 %v861, %v861
        %v868 = vpack.c.bf16 %v863, %v863
        %s869 = sshra.s32 %s582, 3
        %s870 = sand.u32 %s582, 7
        %s871 = smul.u32 %s426, 2
        %s872 = sadd.s32 %s869, %s871
        %s873 = smul.addr %s872, 4
        %s874 = scalar_lea.vmem [#allocation2], %s873
        %875 = vst [vmem:[%s874] sm:$0xf] %v867
        %876 = vst [vmem:[%s874 + $0x4] sm:$0xf] %v868
        %s877 = sand.u32 %s176, 1
        %s878 = scalar_lea.sflag [#allocation5], %s877
        %s879 = sand.u32 %s176, 1
        %s880 = smul.addr %s879, 16
        %s881 = scalar_lea.vmem [#allocation4], %s880
        // Predicated region
        $region79: #{tpu_custom_call.1} parent=39 // pred_check
          %p882 = pneg %p186
        $region80: #{tpu_custom_call.1} parent=39 // pred_check_branch
          %884 = sbr.rel (%p882) target = $region82
        $region81: #{tpu_custom_call.1} parent=39 // pred_region
          %s885 = smul.u32 2, %s25
          %887 = vsyncadd %s878, 0
          %s888 = smul.addr %s24, 2
          %s889 = sadd.s32 %s885, %s888
          %s890 = smul.addr %s889, 8
          %s891 = scalar_lea.hbm %s6, %s890
          %s892 = sshll.u32 %s881, 4
          %s893 = int_to_ptr.vmem [resolvable:$true] %s892
          %s894 = sshll.u32 %s891, 4
          %s895 = int_to_ptr.hbm [resolvable:$true] %s894
          %900 = dma.vmem_to_hbm [thread:$0]  %s893, 256, %s895, %s878, 128, 128, 8
        $region82: #{tpu_custom_call.1} parent=39 // pred_fallthru
          _
      $region40: #{tpu_custom_call.1} parent=5 // pred_fallthru
        _
      %p901 = scmp.le.s32.totalorder 2, %s15
      // Predicated region
      $region83: #{tpu_custom_call.1} parent=5 // pred_check
        %p902 = pneg %p901
      $region84: #{tpu_custom_call.1} parent=5 // pred_check_branch
        %904 = sbr.rel (%p902) target = $region86
      $region85: #{tpu_custom_call.1} parent=5 // pred_region
        %s905 = ssub.s32 %s15, 2
        // Predicated region
        $region87: #{tpu_custom_call.1} parent=85 // pred_check
          %p906 = pneg %p192
        $region88: #{tpu_custom_call.1} parent=85 // pred_check_branch
          %908 = sbr.rel (%p906) target = $region90
        $region89: #{tpu_custom_call.1} parent=85 // pred_region
          %s909 = sand.u32 %s177, 1
          %s910 = scalar_lea.sflag [#allocation5], %s909
          %s911 = sand.u32 %s177, 1
          %s912 = smul.addr %s911, 16
          %s913 = scalar_lea.vmem [#allocation4], %s912
          %915 = dma.done %s910, 256
        $region90: #{tpu_custom_call.1} parent=85 // pred_fallthru
          _
      $region86: #{tpu_custom_call.1} parent=5 // pred_fallthru
        _
    $region6: #{tpu_custom_call.1} parent=1 // loop_footer
      %s19 = sadd.s32 1, %s15
    $region7: #{tpu_custom_call.1} parent=1 // loop_footer_branch
      %14 = sbr.rel target = $region3
    $region8: #{tpu_custom_call.1} parent=1 // loop_exit
      _
    %916 = vsyncpa [#allocation5], 1
    %s917 = scalar_lea.sflag [#allocation5], 1
    %918 = vsyncpa %s917, 1
  %919 = vsyncmov [#allocation3]
  %s920 = vpop.sfrf %919
  %p921 = scmp.eq.s32.totalorder %s920, 0
  %p922 = pneg %p921
  %924 = shalt.err (%p922)

</llo_original>
